<compile_context>
chip_gen: v7x
topology: tpu7x:2x2x1
jax: 0.10.0
libtpu: 0.0.40
codegen_flags: <defaults>
</compile_context>

<pallas_src>
import functools
import numpy as np
import jax
import jax.numpy as jnp
from jax import lax
from jax.experimental import pallas as pl
from jax.experimental.pallas import tpu as pltpu

LANES = 128     # TPU lane width
ACC = 16        # sublane rows per dense chunk == rows of the per-batch accumulator block


def _round_up(x, m):
    return ((x + m - 1) // m) * m


# ----------------------------------------------------------------------------------
# shared host-side IoU helper (anchor matching only, tiny)
# ----------------------------------------------------------------------------------
def _bboxes_iou_np(bboxes_a, bboxes_b, xyxy=True):
    a = np.asarray(bboxes_a)
    b = np.asarray(bboxes_b)
    if xyxy:
        tl = np.maximum(a[:, None, :2], b[None, :, :2])
        br = np.minimum(a[:, None, 2:], b[None, :, 2:])
        area_a = np.prod(a[:, 2:] - a[:, :2], axis=1)
        area_b = np.prod(b[:, 2:] - b[:, :2], axis=1)
    else:
        tl = np.maximum(a[:, None, :2] - a[:, None, 2:] / 2,
                        b[None, :, :2] - b[None, :, 2:] / 2)
        br = np.minimum(a[:, None, :2] + a[:, None, 2:] / 2,
                        b[None, :, :2] + b[None, :, 2:] / 2)
        area_a = np.prod(a[:, 2:], axis=1)
        area_b = np.prod(b[:, 2:], axis=1)
    en = (tl < br).astype(a.dtype).prod(axis=2)
    area_i = np.prod(br - tl, axis=2) * en
    return area_i / (area_a[:, None] + area_b[None, :] - area_i)


# ----------------------------------------------------------------------------------
# Pallas kernel (one grid step == one batch element, all scale layers fused)
# ----------------------------------------------------------------------------------
def _yolo_fused_kernel(lab_ref, pred_ref, forced_ref, geo_ref,
                       spp_ref, spt_ref, spw_ref, out_ref, *,
                       n_lab, layer_meta, iou_coef, w_loc, w_conf):
    b = pl.program_id(0)

    # ---- sparse matched-cell losses (xy / wh / cls), reduced into the (ACC, 128) block ----
    p = spp_ref[0]                                  # (T_pad, 128) lane-dense
    t = spt_ref[0]
    w = spw_ref[0]                                  # per-element BCE weight (0 on pads)
    t_pad = p.shape[0]
    ch = lax.broadcasted_iota(jnp.int32, p.shape, 1)
    is_wh = jnp.logical_and(ch >= 2, ch < 4)
    p_safe = jnp.where(is_wh, 0.5, p)               # wh logits are unbounded: keep log() finite
    lp = jnp.maximum(jnp.log(p_safe), -100.0)       # F.binary_cross_entropy clamp
    l1p = jnp.maximum(jnp.log(1.0 - p_safe), -100.0)
    bce = -(t * lp + (1.0 - t) * l1p)
    d = p - t                                       # wh already scaled by sqrt(2-wh) host-side
    sp_loss = w * bce + jnp.where(is_wh, 0.5 * w_loc, 0.0) * (d * d)
    acc0 = sp_loss[0:ACC, :]
    for k in range(1, t_pad // ACC):                # static, cheap sublane-group reduce
        acc0 = acc0 + sp_loss[k * ACC:(k + 1) * ACC, :]
    out_ref[0] = acc0

    # ---- dense path: bbox decode + divide-free ignore mask + objectness BCE ---------------
    def dense_layer(row_start, n_chunks, lab_base):
        def chunk_body(c, acc):
            r0 = pl.multiple_of(row_start + c * ACC, ACC)
            rows = pl.ds(r0, ACC)
            gx = geo_ref[0, rows, :]
            gy = geo_ref[1, rows, :]
            gw = geo_ref[2, rows, :]
            gh = geo_ref[3, rows, :]
            px = pred_ref[0, 0, rows, :] + gx
            py = pred_ref[0, 1, rows, :] + gy
            pw = jnp.exp(pred_ref[0, 2, rows, :]) * gw
            ph = jnp.exp(pred_ref[0, 3, rows, :]) * gh
            x1 = px - 0.5 * pw
            x2 = px + 0.5 * pw
            y1 = py - 0.5 * ph
            y2 = py + 0.5 * ph
            # iou > thr  <=>  inter > c*area_pred + c*area_label   with  c = thr/(1+thr)
            # (no divide; pred term hoisted out of the label loop, label term prescaled).
            p_area = iou_coef * (pw * ph)
            ign = jnp.zeros((ACC, LANES), jnp.bool_)
            for ti in range(n_lab):                 # static unroll over the label table
                base = lab_base + 5 * ti
                lx1 = lab_ref[b, base]
                ly1 = lab_ref[b, base + 1]
                lx2 = lab_ref[b, base + 2]
                ly2 = lab_ref[b, base + 3]
                l_area = lab_ref[b, base + 4]       # zero label rows can never set the mask
                dx = jnp.maximum(jnp.minimum(x2, lx2) - jnp.maximum(x1, lx1), 0.0)
                dy = jnp.maximum(jnp.minimum(y2, ly2) - jnp.maximum(y1, ly1), 0.0)
                ign = jnp.logical_or(ign, dx * dy > p_area + l_area)
            pobj = pred_ref[0, 4, rows, :]
            forced = forced_ref[0, rows, :]         # 1.0 at matched cells
            obj = jnp.where(ign, forced, 1.0)       # ignore mask, forced back to 1 at matches
            p_eff = pobj * obj
            lpo = jnp.maximum(jnp.log(p_eff), -100.0)
            l1po = jnp.maximum(jnp.log(1.0 - p_eff), -100.0)
            return acc - (forced * lpo + (1.0 - forced) * l1po)
        return lax.fori_loop(0, n_chunks, chunk_body,
                             jnp.zeros((ACC, LANES), jnp.float32))

    for row_start, n_chunks, lab_base in layer_meta:
        out_ref[0] = out_ref[0] + w_conf * dense_layer(row_start, n_chunks, lab_base)


def _build_pallas_call(*, B, R_cat, T_pad, layer_meta, n_lab, iou_coef, w_loc, w_conf):
    kernel = functools.partial(
        _yolo_fused_kernel, n_lab=int(n_lab), layer_meta=tuple(layer_meta),
        iou_coef=float(iou_coef), w_loc=float(w_loc), w_conf=float(w_conf))
    return pl.pallas_call(
        kernel,
        out_shape=jax.ShapeDtypeStruct((B, ACC, LANES), jnp.float32),
        grid_spec=pltpu.PrefetchScalarGridSpec(
            num_scalar_prefetch=0,
            grid=(B,),
            in_specs=[
                pl.BlockSpec(memory_space=pltpu.MemorySpace.SMEM),            # label table
                pl.BlockSpec((1, 5, R_cat, LANES), lambda b: (b, 0, 0, 0)),   # pred x,y,w,h,obj
                pl.BlockSpec((1, R_cat, LANES), lambda b: (b, 0, 0)),         # forced-obj mask
                pl.BlockSpec((4, R_cat, LANES), lambda b: (0, 0, 0)),         # geometry (constant
                                                                              #   index -> 1 DMA)
                pl.BlockSpec((1, T_pad, LANES), lambda b: (b, 0, 0)),         # sparse pred
                pl.BlockSpec((1, T_pad, LANES), lambda b: (b, 0, 0)),         # sparse targets
                pl.BlockSpec((1, T_pad, LANES), lambda b: (b, 0, 0)),         # sparse BCE weights
            ],
            out_specs=pl.BlockSpec((1, ACC, LANES), lambda b: (b, 0, 0)),
        ),
        compiler_params=pltpu.CompilerParams(
            dimension_semantics=("parallel",)),
    )


# ----------------------------------------------------------------------------------
# Host-side glue (mirrors the per-target Python loop of the PyTorch module)
# ----------------------------------------------------------------------------------
class YoloV3LossDenaPallas:
    def __init__(self, img_size, anchors, ref_anchors, mask_anchors,
                 ignore_thresh=0.7, weight_loc=1.0, weight_classes=1.0, weight_conf=1.0):
        self.img_size = img_size
        self.anchors = [np.asarray(a, np.float32) for a in anchors]           # L x (3, 2)
        self.ref_anchors = [np.asarray(r, np.float32) for r in ref_anchors]   # L x (9, 4)
        self.mask_anchors = [list(m) for m in mask_anchors]
        self.ignore_thresh = float(ignore_thresh)
        self.weight_loc = float(weight_loc)
        self.weight_classes = float(weight_classes)
        self.weight_conf = float(weight_conf)
        self._plans = {}

    # -------------------------------------------------------------------------
    def _plan(self, pred_shapes, T):
        key = (pred_shapes, int(T))
        if key in self._plans:
            return self._plans[key]

        L = len(pred_shapes)
        B = pred_shapes[0][0]
        CH = pred_shapes[0][4]
        assert all(s[0] == B and s[4] == CH for s in pred_shapes)
        # TODO(synk): n_classes > 123 would require tiling the sparse channel axis.
        assert CH <= LANES

        layers, geos = [], []
        row_start = 0
        for l, (_, A, ny, nx, _) in enumerate(pred_shapes):
            N = A * ny * nx
            rows = -(-N // LANES)
            r_pad = _round_up(rows, ACC)
            anchor = self.anchors[l]
            grid_i = np.tile(np.arange(nx, dtype=np.float32)[None, None, :], (A, ny, 1))
            grid_j = np.tile(np.arange(ny, dtype=np.float32)[None, :, None], (A, 1, nx))
            anc_w = np.broadcast_to(anchor[:, 0][:, None, None], (A, ny, nx))
            anc_h = np.broadcast_to(anchor[:, 1][:, None, None], (A, ny, nx))
            g = np.zeros((4, r_pad * LANES), np.float32)
            g[:, :N] = np.stack([grid_i, grid_j, anc_w, anc_h], 0).reshape(4, N)
            geos.append(g.reshape(4, r_pad, LANES))
            layers.append(dict(A=A, ny=ny, nx=nx, N=N, r_pad=r_pad,
                               row_start=row_start, n_chunks=r_pad // ACC,
                               lab_base=l * 5 * T))
            row_start += r_pad
        R_cat = row_start
        # geometry depends only on static shapes / anchors: built once here, DMA'd once per
        # pallas_call (its block index is constant across the grid).
        geo = jnp.asarray(np.concatenate(geos, axis=1))
        T_pad = max(ACC, _round_up(T, ACC))

        kernel_meta = tuple((lay['row_start'], lay['n_chunks'], lay['lab_base'])
                            for lay in layers)
        pallas_fn = _build_pallas_call(
            B=B, R_cat=R_cat, T_pad=T_pad, layer_meta=kernel_meta, n_lab=T,
            iou_coef=self.ignore_thresh / (1.0 + self.ignore_thresh),
            w_loc=self.weight_loc, w_conf=self.weight_conf)

        layer_pads = tuple((lay['r_pad'], lay['N']) for lay in layers)

        def device_fn(preds, geo_arr, lab, forced, sp_tgt, sp_w,
                      sl_a, sl_j, sl_i, sl_slot, sl_scale, sl_valid):
            # channel-major relayout of only the 5 needed pred channels, fused into the same
            # XLA program as the kernel.
            # TODO(synk): ideally the detection head emits this (B, 5, rows, 128) layout
            # directly so even this single fused transpose disappears.
            parts = []
            for l, p in enumerate(preds):
                r_pad, N = layer_pads[l]
                p5 = jnp.transpose(p[..., 0:5], (0, 4, 1, 2, 3)).reshape(B, 5, N)
                p5 = jnp.pad(p5, ((0, 0), (0, 0), (0, r_pad * LANES - N)))
                parts.append(p5.reshape(B, 5, r_pad, LANES))
            pred5 = jnp.concatenate(parts, axis=2)

            # predictions gathered at the <=T matched cells (sparse path)
            bb = jnp.arange(B, dtype=jnp.int32)[:, None]
            sp_pred = jnp.zeros((B, T_pad, LANES), jnp.float32)
            for l, p in enumerate(preds):
                g = p[bb, sl_a[l], sl_j[l], sl_i[l], :]               # (B, T, CH)
                g = g.at[..., 2:4].multiply(sl_scale[l][..., None])   # wh pre-scaled
                g = g * sl_valid[l][..., None]
                sp_pred = sp_pred.at[bb, sl_slot[l], 0:CH].add(g)

            out = pallas_fn(lab, pred5, forced, geo_arr, sp_pred, sp_tgt, sp_w)
            return jnp.sum(out)

        plan = dict(L=L, B=B, CH=CH, T_pad=T_pad, R_cat=R_cat, layers=layers,
                    geo=geo, fn=jax.jit(device_fn))
        self._plans[key] = plan
        return plan

    # -------------------------------------------------------------------------
    def __call__(self, preds, targets):
        preds = list(preds)
        # TODO(synk): the per-target anchor matching / matched-cell scatter below is
        # inherently scalar and data dependent (a Python loop in the PyTorch reference too);
        # it stays host-side and only produces tiny per-target tables.
        targets_np = np.asarray(targets, np.float32)
        B, T = targets_np.shape[0], targets_np.shape[1]
        pred_shapes = tuple(tuple(int(d) for d in p.shape) for p in preds)
        plan = self._plan(pred_shapes, T)
        L, CH = plan['L'], plan['CH']
        T_pad, R_cat = plan['T_pad'], plan['R_cat']
        layers = plan['layers']
        num_targets = (targets_np.sum(axis=2) > 0).sum(axis=1)
        coef = self.ignore_thresh / (1.0 + self.ignore_thresh)

        lab = np.zeros((B, L * 5 * T), np.float32)       # per label: x1,y1,x2,y2, c*area
        forced = np.zeros((B, R_cat, LANES), np.float32)
        sp_tgt = np.zeros((B, T_pad, LANES), np.float32)
        sp_w = np.zeros((B, T_pad, LANES), np.float32)
        sl_a = np.zeros((L, B, T), np.int32)
        sl_j = np.zeros((L, B, T), np.int32)
        sl_i = np.zeros((L, B, T), np.int32)
        sl_slot = np.zeros((L, B, T), np.int32)
        sl_scale = np.zeros((L, B, T), np.float32)
        sl_valid = np.zeros((L, B, T), np.float32)

        for b in range(B):
            n = int(num_targets[b])
            if n == 0:
                continue
            cells = {}            # (layer, a, j, i) -> (combined slot, per-layer gather row)
            n_used = [0] * L
            slot_count = 0
            for l in range(L):
                lay = layers[l]
                A, ny, nx = lay['A'], lay['ny'], lay['nx']
                anchor = self.anchors[l]
                ref_anchor = self.ref_anchors[l]
                mask_anchor = self.mask_anchors[l]
                labels_l = targets_np[b, :n].copy()
                labels_l[:, 1::2] *= nx
                labels_l[:, 2::2] *= ny
                label_bbox = np.zeros((n, 4), np.float32)
                label_bbox[:, 2:4] = labels_l[:, 3:5]
                anchor_ious = _bboxes_iou_np(label_bbox, ref_anchor, xyxy=True)
                best_idx = anchor_ious.argmax(axis=1)
                best_mask = np.isin(best_idx, np.asarray(mask_anchor))
                best_a = best_idx % 3
                if best_mask.sum() == 0:
                    continue
                label_bbox[:, 0:2] = labels_l[:, 1:3]
                # label table for the in-kernel ignore mask; the area slot is prescaled with
                # thr/(1+thr) so the kernel IoU test is a single add + compare per label.
                half = label_bbox[:, 2:4] * 0.5
                base = lay['lab_base']
                lab[b, base + 0:base + 5 * n:5] = label_bbox[:, 0] - half[:, 0]
                lab[b, base + 1:base + 5 * n:5] = label_bbox[:, 1] - half[:, 1]
                lab[b, base + 2:base + 5 * n:5] = label_bbox[:, 0] + half[:, 0]
                lab[b, base + 3:base + 5 * n:5] = label_bbox[:, 1] + half[:, 1]
                lab[b, base + 4:base + 5 * n:5] = coef * label_bbox[:, 2] * label_bbox[:, 3]
                # matched-cell scatter: last write wins for xy/wh/scale, class bits accumulate
                for idx in np.nonzero(best_mask)[0]:
                    i = int(labels_l[idx, 1])
                    j = int(labels_l[idx, 2])
                    a = int(best_a[idx])
                    ck = (l, a, j, i)
                    if ck in cells:
                        r, m = cells[ck]
                    else:
                        r, m = slot_count, n_used[l]
                        slot_count += 1
                        n_used[l] += 1
                        cells[ck] = (r, m)
                        sl_a[l, b, m] = a
                        sl_j[l, b, m] = j
                        sl_i[l, b, m] = i
                        sl_slot[l, b, m] = r
                        sl_valid[l, b, m] = 1.0
                        flat = a * ny * nx + j * nx + i
                        forced[b, lay['row_start'] + flat // LANES, flat % LANES] = 1.0
                    scale = float(np.sqrt(2.0 - labels_l[idx, 3] * labels_l[idx, 4] / nx / ny))
                    sl_scale[l, b, m] = scale
                    sp_tgt[b, r, 0:2] = (labels_l[idx, 1:3]
                                         - labels_l[idx, 1:3].astype(np.int32))
                    sp_tgt[b, r, 2:4] = np.log(labels_l[idx, 3:5] / anchor[a] + 1e-16) * scale
                    sp_tgt[b, r, 5 + int(labels_l[idx, 0])] = 1.0
                    sp_w[b, r, 0:2] = self.weight_loc * scale * scale
                    sp_w[b, r, 5:CH] = self.weight_classes
            if slot_count > T_pad:
                raise ValueError("matched-cell table overflow (conflicting per-layer "
                                 "anchor matches on non-square grids)")

        return plan['fn'](preds, plan['geo'], lab, forced, sp_tgt, sp_w,
                          sl_a, sl_j, sl_i, sl_slot, sl_scale, sl_valid)


# ----------------------------------------------------------------------------------
# Pure-numpy reference (faithful port of the PyTorch module) for a correctness check
# ----------------------------------------------------------------------------------
def _reference_loss(preds, targets, anchors, ref_anchors, mask_anchors,
                    ignore_thresh, weight_loc, weight_classes, weight_conf):
    preds = [np.asarray(p, np.float32) for p in preds]
    targets = np.asarray(targets, np.float32)
    num_targets = (targets.sum(axis=2) > 0).sum(axis=1)
    total = 0.0
    for nl, pred in enumerate(preds):
        B, A, ny, nx, CH = pred.shape
        anchor = np.asarray(anchors[nl], np.float32)
        ref_anchor = np.asarray(ref_anchors[nl], np.float32)
        mask_anchor = list(mask_anchors[nl])

        pred_bbox = pred[..., :4].copy()
        pred_bbox[..., 0] += np.arange(nx, dtype=np.float32)[None, None, None, :]
        pred_bbox[..., 1] += np.arange(ny, dtype=np.float32)[None, None, :, None]
        pred_bbox[..., 2] = np.exp(pred_bbox[..., 2]) * anchor[:, 0][None, :, None, None]
        pred_bbox[..., 3] = np.exp(pred_bbox[..., 3]) * anchor[:, 1][None, :, None, None]

        labels = targets.copy()
        labels[..., 1::2] *= nx
        labels[..., 2::2] *= ny

        tgt_mask = np.zeros((B, A, ny, nx, CH - 1), np.float32)
        tgt_scale = np.zeros((B, A, ny, nx, 2), np.float32)
        obj_mask = np.ones((B, A, ny, nx), np.float32)
        tgt_enc = np.zeros_like(pred)

        for b in range(B):
            n = int(num_targets[b])
            if n == 0:
                continue
            label_bbox = np.zeros((n, 4), np.float32)
            label_bbox[:, 2:4] = labels[b, :n, 3:5]
            anchor_ious = _bboxes_iou_np(label_bbox, ref_anchor, xyxy=True)
            best_idx = anchor_ious.argmax(axis=1)
            best_mask = np.isin(best_idx, np.asarray(mask_anchor))
            best_a = best_idx % 3
            if best_mask.sum() == 0:
                continue
            label_bbox[:, 0:2] = labels[b, :n, 1:3]
            pred_ious = _bboxes_iou_np(pred_bbox[b].reshape(-1, 4), label_bbox, xyxy=False)
            pred_best = pred_ious.max(axis=1).reshape(A, ny, nx)
            obj_mask[b] = (pred_best <= ignore_thresh).astype(np.float32)
            for idx in np.nonzero(best_mask)[0]:
                i = int(labels[b, idx, 1]); j = int(labels[b, idx, 2]); a = int(best_a[idx])
                obj_mask[b, a, j, i] = 1.0
                tgt_mask[b, a, j, i, :] = 1.0
                tgt_scale[b, a, j, i, :] = np.sqrt(
                    2.0 - labels[b, idx, 3] * labels[b, idx, 4] / nx / ny)
                tgt_enc[b, a, j, i, 0:2] = (labels[b, idx, 1:3]
                                            - labels[b, idx, 1:3].astype(np.int32))
                tgt_enc[b, a, j, i, 2:4] = np.log(labels[b, idx, 3:5] / anchor[a] + 1e-16)
                tgt_enc[b, a, j, i, 4] = 1.0
                tgt_enc[b, a, j, i, 5 + int(labels[b, idx, 0])] = 1.0

        p = pred.copy()
        t = tgt_enc
        nc_idx = list(range(0, 4)) + list(range(5, CH))
        p[..., 4] *= obj_mask
        p[..., nc_idx] *= tgt_mask
        p[..., 2:4] *= tgt_scale
        t[..., 4] *= obj_mask
        t[..., nc_idx] *= tgt_mask
        t[..., 2:4] *= tgt_scale

        def bce_sum(pp, tt, w=None):
            with np.errstate(divide='ignore', invalid='ignore'):
                lp = np.log(pp)
                l1p = np.log(1.0 - pp)
            lp = np.maximum(lp, -100.0)
            l1p = np.maximum(l1p, -100.0)
            v = -(tt * lp + (1.0 - tt) * l1p)
            if w is not None:
                v = v * w
            return float(v.sum())

        loss_xy = bce_sum(p[..., 0:2], t[..., 0:2], tgt_scale * tgt_scale)
        loss_wh = float(((p[..., 2:4] - t[..., 2:4]) ** 2).sum()) / 2.0
        loss_obj = bce_sum(p[..., 4], t[..., 4])
        loss_cls = bce_sum(p[..., 5:], t[..., 5:])
        total += (weight_loc * (loss_xy + loss_wh)
                  + weight_conf * loss_obj + weight_classes * loss_cls)
    return total


# ----------------------------------------------------------------------------------
# Demo / smoke test
# ----------------------------------------------------------------------------------
if __name__ == "__main__":
    key = jax.random.PRNGKey(0)
    B, A, n_classes, T = 2, 3, 4, 6
    CH = 5 + n_classes
    img_size = 128

    # deterministic, synthetic anchor configuration (standard YOLOv3-style shapes)
    all_anchors = np.asarray([(10, 13), (16, 30), (33, 23),
                              (30, 61), (62, 45), (59, 119),
                              (116, 90), (156, 198), (373, 326)], np.float32)
    mask_anchors = [[6, 7, 8], [3, 4, 5], [0, 1, 2]]
    strides = [32, 16, 8]                               # layer n grid = img_size // stride
    anchors = [all_anchors[mask_anchors[n]] / strides[n] for n in range(3)]
    ref_anchors = [np.concatenate([np.zeros((9, 2), np.float32),
                                   all_anchors / strides[n]], axis=1)
                   for n in range(3)]

    loss_mod = YoloV3LossDenaPallas(img_size, anchors, ref_anchors, mask_anchors,
                                    ignore_thresh=0.7, weight_loc=1.0,
                                    weight_classes=1.0, weight_conf=1.0)

    # predictions per scale: (B, A, G, G, 5 + n_classes); xy/obj/cls channels in (0, 1)
    preds = []
    for s in strides:
        G = img_size // s
        key, sub = jax.random.split(key)
        raw = jax.random.normal(sub, (B, A, G, G, CH), jnp.float32)
        p = raw.at[..., 0:2].set(jax.nn.sigmoid(raw[..., 0:2]))
        p = p.at[..., 2:4].set(0.5 * raw[..., 2:4])
        p = p.at[..., 4:].set(jax.nn.sigmoid(raw[..., 4:]))
        preds.append(p)

    # targets: (B, T, 5) = [class, cx, cy, w, h] normalized to [0, 1], front-packed rows
    key, kc, kxy, kwh = jax.random.split(key, 4)
    cls = jax.random.randint(kc, (B, T), 0, n_classes).astype(jnp.float32)
    cxy = jax.random.uniform(kxy, (B, T, 2), minval=0.1, maxval=0.9)
    wh = jax.random.uniform(kwh, (B, T, 2), minval=0.05, maxval=0.6)
    tgt = jnp.concatenate([cls[..., None], cxy, wh], axis=2)
    counts = jnp.array([4, 3])
    row_mask = (jnp.arange(T)[None, :] < counts[:, None]).astype(jnp.float32)
    targets = tgt * row_mask[..., None]

    loss = loss_mod(preds, targets)
    loss = jax.block_until_ready(loss)
    assert bool(jnp.isfinite(loss)), "loss is not finite"

    ref = _reference_loss(preds, targets, anchors, ref_anchors, mask_anchors,
                          ignore_thresh=0.7, weight_loc=1.0,
                          weight_classes=1.0, weight_conf=1.0)
    rel = abs(float(loss) - ref) / max(1.0, abs(ref))
    assert rel < 5e-3, f"mismatch vs reference: pallas={float(loss)} ref={ref} rel={rel}"

    print("KERNEL_OK")
</pallas_src>

<mosaic_0001>
module attributes {stable_mosaic.version = 11 : i64} {
  func.func @_yolo_fused_kernel(%arg0: i32, %arg1: memref<2x90xf32, #tpu.memory_space<smem>>, %arg2: memref<1x5x48x128xf32, #tpu.memory_space<vmem>>, %arg3: memref<1x48x128xf32, #tpu.memory_space<vmem>>, %arg4: memref<4x48x128xf32, #tpu.memory_space<vmem>>, %arg5: memref<1x16x128xf32, #tpu.memory_space<vmem>>, %arg6: memref<1x16x128xf32, #tpu.memory_space<vmem>>, %arg7: memref<1x16x128xf32, #tpu.memory_space<vmem>>, %arg8: memref<1x16x128xf32, #tpu.memory_space<vmem>>) attributes {dimension_semantics = [#tpu.dimension_semantics<parallel>], iteration_bounds = array<i64: 2>, scalar_prefetch = 0 : i64, scratch_operands = 0 : i64, tpu.core_type = #tpu.core_type<tc>, window_params = [{transform_indices = @transform_0, window_bounds = array<i64: 2, 90>}, {transform_indices = @transform_1, window_bounds = array<i64: 1, 5, 48, 128>}, {transform_indices = @transform_2, window_bounds = array<i64: 1, 48, 128>}, {pipeline_mode = #tpu.pipeline_mode<synchronous>, transform_indices = @transform_3, window_bounds = array<i64: 4, 48, 128>}, {transform_indices = @transform_4, window_bounds = array<i64: 1, 16, 128>}, {transform_indices = @transform_5, window_bounds = array<i64: 1, 16, 128>}, {transform_indices = @transform_6, window_bounds = array<i64: 1, 16, 128>}, {transform_indices = @transform_7, window_bounds = array<i64: 1, 16, 128>}]} {
    %c0 = arith.constant 0 : index
    %c0_0 = arith.constant 0 : index
    %c0_1 = arith.constant 0 : index
    %0 = vector.load %arg5[%c0, %c0_0, %c0_1] : memref<1x16x128xf32, #tpu.memory_space<vmem>>, vector<1x16x128xf32>
    %1 = vector.shape_cast %0 : vector<1x16x128xf32> to vector<16x128xf32>
    %c0_2 = arith.constant 0 : index
    %c0_3 = arith.constant 0 : index
    %c0_4 = arith.constant 0 : index
    %2 = vector.load %arg6[%c0_2, %c0_3, %c0_4] : memref<1x16x128xf32, #tpu.memory_space<vmem>>, vector<1x16x128xf32>
    %3 = vector.shape_cast %2 : vector<1x16x128xf32> to vector<16x128xf32>
    %c0_5 = arith.constant 0 : index
    %c0_6 = arith.constant 0 : index
    %c0_7 = arith.constant 0 : index
    %4 = vector.load %arg7[%c0_5, %c0_6, %c0_7] : memref<1x16x128xf32, #tpu.memory_space<vmem>>, vector<1x16x128xf32>
    %5 = vector.shape_cast %4 : vector<1x16x128xf32> to vector<16x128xf32>
    %6 = tpu.iota {dimensions = array<i32: 1>} : vector<16x128xi32>
    %c2_i32 = arith.constant 2 : i32
    %7 = vector.broadcast %c2_i32 : i32 to vector<16x128xi32>
    %8 = arith.cmpi sge, %6, %7 : vector<16x128xi32>
    %c4_i32 = arith.constant 4 : i32
    %9 = vector.broadcast %c4_i32 : i32 to vector<16x128xi32>
    %10 = arith.cmpi slt, %6, %9 : vector<16x128xi32>
    %11 = arith.andi %8, %10 : vector<16x128xi1>
    %cst = arith.constant 5.000000e-01 : f32
    %12 = vector.broadcast %cst : f32 to vector<16x128xf32>
    %13 = arith.select %11, %12, %1 : vector<16x128xi1>, vector<16x128xf32>
    %14 = math.log %13 : vector<16x128xf32>
    %cst_8 = arith.constant -1.000000e+02 : f32
    %15 = vector.broadcast %cst_8 : f32 to vector<16x128xf32>
    %16 = arith.maximumf %14, %15 : vector<16x128xf32>
    %cst_9 = arith.constant 1.000000e+00 : f32
    %17 = vector.broadcast %cst_9 : f32 to vector<16x128xf32>
    %18 = arith.subf %17, %13 : vector<16x128xf32>
    %19 = math.log %18 : vector<16x128xf32>
    %cst_10 = arith.constant -1.000000e+02 : f32
    %20 = vector.broadcast %cst_10 : f32 to vector<16x128xf32>
    %21 = arith.maximumf %19, %20 : vector<16x128xf32>
    %22 = arith.mulf %3, %16 : vector<16x128xf32>
    %cst_11 = arith.constant 1.000000e+00 : f32
    %23 = vector.broadcast %cst_11 : f32 to vector<16x128xf32>
    %24 = arith.subf %23, %3 : vector<16x128xf32>
    %25 = arith.mulf %24, %21 : vector<16x128xf32>
    %26 = arith.addf %22, %25 : vector<16x128xf32>
    %cst_12 = arith.constant 0.000000e+00 : f32
    %27 = vector.broadcast %cst_12 : f32 to vector<16x128xf32>
    %28 = arith.subf %27, %26 : vector<16x128xf32>
    %29 = arith.subf %1, %3 : vector<16x128xf32>
    %30 = arith.mulf %5, %28 : vector<16x128xf32>
    %cst_13 = arith.constant 5.000000e-01 : f32
    %cst_14 = arith.constant 0.000000e+00 : f32
    %31 = vector.broadcast %cst_13 : f32 to vector<16x128xf32>
    %32 = vector.broadcast %cst_14 : f32 to vector<16x128xf32>
    %33 = arith.select %11, %31, %32 : vector<16x128xi1>, vector<16x128xf32>
    %34 = arith.mulf %29, %29 : vector<16x128xf32>
    %35 = arith.mulf %33, %34 : vector<16x128xf32>
    %36 = arith.addf %30, %35 : vector<16x128xf32>
    %c0_15 = arith.constant 0 : index
    %c0_16 = arith.constant 0 : index
    %c0_17 = arith.constant 0 : index
    %37 = vector.load %arg8[%c0_15, %c0_16, %c0_17] : memref<1x16x128xf32, #tpu.memory_space<vmem>>, vector<1x16x128xf32>
    %38 = vector.shape_cast %37 : vector<1x16x128xf32> to vector<16x128xf32>
    %39 = vector.shape_cast %36 : vector<16x128xf32> to vector<1x16x128xf32>
    tpu.vector_store %arg8[%c0_15, %c0_16, %c0_17], %39 {strides = array<i32>} : memref<1x16x128xf32, #tpu.memory_space<vmem>>, vector<1x16x128xf32>,
    %c0_18 = arith.constant 0 : index
    %c0_19 = arith.constant 0 : index
    %c0_20 = arith.constant 0 : index
    %40 = vector.load %arg8[%c0_18, %c0_19, %c0_20] : memref<1x16x128xf32, #tpu.memory_space<vmem>>, vector<1x16x128xf32>
    %41 = vector.shape_cast %40 : vector<1x16x128xf32> to vector<16x128xf32>
    %cst_21 = arith.constant 0.000000e+00 : f32
    %42 = vector.broadcast %cst_21 : f32 to vector<16x128xf32>
    %c0_i32 = arith.constant 0 : i32
    %c16_i32 = arith.constant 16 : i32
    %43 = arith.muli %c0_i32, %c16_i32 : i32
    %c0_i32_22 = arith.constant 0 : i32
    %44 = arith.addi %c0_i32_22, %43 : i32
    %45 = tpu.assume_multiple %44, 16 : i32
    %c0_23 = arith.constant 0 : index
    %46 = arith.index_cast %45 : i32 to index
    %c0_24 = arith.constant 0 : index
    %47 = vector.load %arg4[%c0_23, %46, %c0_24] : memref<4x48x128xf32, #tpu.memory_space<vmem>>, vector<1x16x128xf32>
    %48 = vector.shape_cast %47 : vector<1x16x128xf32> to vector<16x128xf32>
    %c1 = arith.constant 1 : index
    %49 = arith.index_cast %45 : i32 to index
    %c0_25 = arith.constant 0 : index
    %50 = vector.load %arg4[%c1, %49, %c0_25] : memref<4x48x128xf32, #tpu.memory_space<vmem>>, vector<1x16x128xf32>
    %51 = vector.shape_cast %50 : vector<1x16x128xf32> to vector<16x128xf32>
    %c2 = arith.constant 2 : index
    %52 = arith.index_cast %45 : i32 to index
    %c0_26 = arith.constant 0 : index
    %53 = vector.load %arg4[%c2, %52, %c0_26] : memref<4x48x128xf32, #tpu.memory_space<vmem>>, vector<1x16x128xf32>
    %54 = vector.shape_cast %53 : vector<1x16x128xf32> to vector<16x128xf32>
    %c3 = arith.constant 3 : index
    %55 = arith.index_cast %45 : i32 to index
    %c0_27 = arith.constant 0 : index
    %56 = vector.load %arg4[%c3, %55, %c0_27] : memref<4x48x128xf32, #tpu.memory_space<vmem>>, vector<1x16x128xf32>
    %57 = vector.shape_cast %56 : vector<1x16x128xf32> to vector<16x128xf32>
    %c0_28 = arith.constant 0 : index
    %c0_29 = arith.constant 0 : index
    %58 = arith.index_cast %45 : i32 to index
    %c0_30 = arith.constant 0 : index
    %59 = vector.load %arg2[%c0_28, %c0_29, %58, %c0_30] : memref<1x5x48x128xf32, #tpu.memory_space<vmem>>, vector<1x1x16x128xf32>
    %60 = vector.shape_cast %59 : vector<1x1x16x128xf32> to vector<16x128xf32>
    %61 = arith.addf %60, %48 : vector<16x128xf32>
    %c0_31 = arith.constant 0 : index
    %c1_32 = arith.constant 1 : index
    %62 = arith.index_cast %45 : i32 to index
    %c0_33 = arith.constant 0 : index
    %63 = vector.load %arg2[%c0_31, %c1_32, %62, %c0_33] : memref<1x5x48x128xf32, #tpu.memory_space<vmem>>, vector<1x1x16x128xf32>
    %64 = vector.shape_cast %63 : vector<1x1x16x128xf32> to vector<16x128xf32>
    %65 = arith.addf %64, %51 : vector<16x128xf32>
    %c0_34 = arith.constant 0 : index
    %c2_35 = arith.constant 2 : index
    %66 = arith.index_cast %45 : i32 to index
    %c0_36 = arith.constant 0 : index
    %67 = vector.load %arg2[%c0_34, %c2_35, %66, %c0_36] : memref<1x5x48x128xf32, #tpu.memory_space<vmem>>, vector<1x1x16x128xf32>
    %68 = vector.shape_cast %67 : vector<1x1x16x128xf32> to vector<16x128xf32>
    %69 = math.exp %68 : vector<16x128xf32>
    %70 = arith.mulf %69, %54 : vector<16x128xf32>
    %c0_37 = arith.constant 0 : index
    %c3_38 = arith.constant 3 : index
    %71 = arith.index_cast %45 : i32 to index
    %c0_39 = arith.constant 0 : index
    %72 = vector.load %arg2[%c0_37, %c3_38, %71, %c0_39] : memref<1x5x48x128xf32, #tpu.memory_space<vmem>>, vector<1x1x16x128xf32>
    %73 = vector.shape_cast %72 : vector<1x1x16x128xf32> to vector<16x128xf32>
    %74 = math.exp %73 : vector<16x128xf32>
    %75 = arith.mulf %74, %57 : vector<16x128xf32>
    %cst_40 = arith.constant 5.000000e-01 : f32
    %76 = vector.broadcast %cst_40 : f32 to vector<16x128xf32>
    %77 = arith.mulf %76, %70 : vector<16x128xf32>
    %78 = arith.subf %61, %77 : vector<16x128xf32>
    %cst_41 = arith.constant 5.000000e-01 : f32
    %79 = vector.broadcast %cst_41 : f32 to vector<16x128xf32>
    %80 = arith.mulf %79, %70 : vector<16x128xf32>
    %81 = arith.addf %61, %80 : vector<16x128xf32>
    %cst_42 = arith.constant 5.000000e-01 : f32
    %82 = vector.broadcast %cst_42 : f32 to vector<16x128xf32>
    %83 = arith.mulf %82, %75 : vector<16x128xf32>
    %84 = arith.subf %65, %83 : vector<16x128xf32>
    %cst_43 = arith.constant 5.000000e-01 : f32
    %85 = vector.broadcast %cst_43 : f32 to vector<16x128xf32>
    %86 = arith.mulf %85, %75 : vector<16x128xf32>
    %87 = arith.addf %65, %86 : vector<16x128xf32>
    %88 = arith.mulf %70, %75 : vector<16x128xf32>
    %cst_44 = arith.constant 0.411764711 : f32
    %89 = vector.broadcast %cst_44 : f32 to vector<16x128xf32>
    %90 = arith.mulf %89, %88 : vector<16x128xf32>
    %false = arith.constant false
    %91 = vector.broadcast %false : i1 to vector<16x128xi1>
    %92 = arith.index_cast %arg0 : i32 to index
    %c0_45 = arith.constant 0 : index
    %93 = memref.load %arg1[%92, %c0_45] : memref<2x90xf32, #tpu.memory_space<smem>>
    %94 = arith.index_cast %arg0 : i32 to index
    %c1_46 = arith.constant 1 : index
    %95 = memref.load %arg1[%94, %c1_46] : memref<2x90xf32, #tpu.memory_space<smem>>
    %96 = arith.index_cast %arg0 : i32 to index
    %c2_47 = arith.constant 2 : index
    %97 = memref.load %arg1[%96, %c2_47] : memref<2x90xf32, #tpu.memory_space<smem>>
    %98 = arith.index_cast %arg0 : i32 to index
    %c3_48 = arith.constant 3 : index
    %99 = memref.load %arg1[%98, %c3_48] : memref<2x90xf32, #tpu.memory_space<smem>>
    %100 = arith.index_cast %arg0 : i32 to index
    %c4 = arith.constant 4 : index
    %101 = memref.load %arg1[%100, %c4] : memref<2x90xf32, #tpu.memory_space<smem>>
    %102 = vector.broadcast %97 : f32 to vector<16x128xf32>
    %103 = arith.minimumf %81, %102 : vector<16x128xf32>
    %104 = vector.broadcast %93 : f32 to vector<16x128xf32>
    %105 = arith.maximumf %78, %104 : vector<16x128xf32>
    %106 = arith.subf %103, %105 : vector<16x128xf32>
    %cst_49 = arith.constant 0.000000e+00 : f32
    %107 = vector.broadcast %cst_49 : f32 to vector<16x128xf32>
    %108 = arith.maximumf %106, %107 : vector<16x128xf32>
    %109 = vector.broadcast %99 : f32 to vector<16x128xf32>
    %110 = arith.minimumf %87, %109 : vector<16x128xf32>
    %111 = vector.broadcast %95 : f32 to vector<16x128xf32>
    %112 = arith.maximumf %84, %111 : vector<16x128xf32>
    %113 = arith.subf %110, %112 : vector<16x128xf32>
    %cst_50 = arith.constant 0.000000e+00 : f32
    %114 = vector.broadcast %cst_50 : f32 to vector<16x128xf32>
    %115 = arith.maximumf %113, %114 : vector<16x128xf32>
    %116 = arith.mulf %108, %115 : vector<16x128xf32>
    %117 = vector.broadcast %101 : f32 to vector<16x128xf32>
    %118 = arith.addf %90, %117 : vector<16x128xf32>
    %119 = arith.cmpf ogt, %116, %118 : vector<16x128xf32>
    %120 = arith.ori %91, %119 : vector<16x128xi1>
    %121 = arith.index_cast %arg0 : i32 to index
    %c5 = arith.constant 5 : index
    %122 = memref.load %arg1[%121, %c5] : memref<2x90xf32, #tpu.memory_space<smem>>
    %123 = arith.index_cast %arg0 : i32 to index
    %c6 = arith.constant 6 : index
    %124 = memref.load %arg1[%123, %c6] : memref<2x90xf32, #tpu.memory_space<smem>>
    %125 = arith.index_cast %arg0 : i32 to index
    %c7 = arith.constant 7 : index
    %126 = memref.load %arg1[%125, %c7] : memref<2x90xf32, #tpu.memory_space<smem>>
    %127 = arith.index_cast %arg0 : i32 to index
    %c8 = arith.constant 8 : index
    %128 = memref.load %arg1[%127, %c8] : memref<2x90xf32, #tpu.memory_space<smem>>
    %129 = arith.index_cast %arg0 : i32 to index
    %c9 = arith.constant 9 : index
    %130 = memref.load %arg1[%129, %c9] : memref<2x90xf32, #tpu.memory_space<smem>>
    %131 = vector.broadcast %126 : f32 to vector<16x128xf32>
    %132 = arith.minimumf %81, %131 : vector<16x128xf32>
    %133 = vector.broadcast %122 : f32 to vector<16x128xf32>
    %134 = arith.maximumf %78, %133 : vector<16x128xf32>
    %135 = arith.subf %132, %134 : vector<16x128xf32>
    %cst_51 = arith.constant 0.000000e+00 : f32
    %136 = vector.broadcast %cst_51 : f32 to vector<16x128xf32>
    %137 = arith.maximumf %135, %136 : vector<16x128xf32>
    %138 = vector.broadcast %128 : f32 to vector<16x128xf32>
    %139 = arith.minimumf %87, %138 : vector<16x128xf32>
    %140 = vector.broadcast %124 : f32 to vector<16x128xf32>
    %141 = arith.maximumf %84, %140 : vector<16x128xf32>
    %142 = arith.subf %139, %141 : vector<16x128xf32>
    %cst_52 = arith.constant 0.000000e+00 : f32
    %143 = vector.broadcast %cst_52 : f32 to vector<16x128xf32>
    %144 = arith.maximumf %142, %143 : vector<16x128xf32>
    %145 = arith.mulf %137, %144 : vector<16x128xf32>
    %146 = vector.broadcast %130 : f32 to vector<16x128xf32>
    %147 = arith.addf %90, %146 : vector<16x128xf32>
    %148 = arith.cmpf ogt, %145, %147 : vector<16x128xf32>
    %149 = arith.ori %120, %148 : vector<16x128xi1>
    %150 = arith.index_cast %arg0 : i32 to index
    %c10 = arith.constant 10 : index
    %151 = memref.load %arg1[%150, %c10] : memref<2x90xf32, #tpu.memory_space<smem>>
    %152 = arith.index_cast %arg0 : i32 to index
    %c11 = arith.constant 11 : index
    %153 = memref.load %arg1[%152, %c11] : memref<2x90xf32, #tpu.memory_space<smem>>
    %154 = arith.index_cast %arg0 : i32 to index
    %c12 = arith.constant 12 : index
    %155 = memref.load %arg1[%154, %c12] : memref<2x90xf32, #tpu.memory_space<smem>>
    %156 = arith.index_cast %arg0 : i32 to index
    %c13 = arith.constant 13 : index
    %157 = memref.load %arg1[%156, %c13] : memref<2x90xf32, #tpu.memory_space<smem>>
    %158 = arith.index_cast %arg0 : i32 to index
    %c14 = arith.constant 14 : index
    %159 = memref.load %arg1[%158, %c14] : memref<2x90xf32, #tpu.memory_space<smem>>
    %160 = vector.broadcast %155 : f32 to vector<16x128xf32>
    %161 = arith.minimumf %81, %160 : vector<16x128xf32>
    %162 = vector.broadcast %151 : f32 to vector<16x128xf32>
    %163 = arith.maximumf %78, %162 : vector<16x128xf32>
    %164 = arith.subf %161, %163 : vector<16x128xf32>
    %cst_53 = arith.constant 0.000000e+00 : f32
    %165 = vector.broadcast %cst_53 : f32 to vector<16x128xf32>
    %166 = arith.maximumf %164, %165 : vector<16x128xf32>
    %167 = vector.broadcast %157 : f32 to vector<16x128xf32>
    %168 = arith.minimumf %87, %167 : vector<16x128xf32>
    %169 = vector.broadcast %153 : f32 to vector<16x128xf32>
    %170 = arith.maximumf %84, %169 : vector<16x128xf32>
    %171 = arith.subf %168, %170 : vector<16x128xf32>
    %cst_54 = arith.constant 0.000000e+00 : f32
    %172 = vector.broadcast %cst_54 : f32 to vector<16x128xf32>
    %173 = arith.maximumf %171, %172 : vector<16x128xf32>
    %174 = arith.mulf %166, %173 : vector<16x128xf32>
    %175 = vector.broadcast %159 : f32 to vector<16x128xf32>
    %176 = arith.addf %90, %175 : vector<16x128xf32>
    %177 = arith.cmpf ogt, %174, %176 : vector<16x128xf32>
    %178 = arith.ori %149, %177 : vector<16x128xi1>
    %179 = arith.index_cast %arg0 : i32 to index
    %c15 = arith.constant 15 : index
    %180 = memref.load %arg1[%179, %c15] : memref<2x90xf32, #tpu.memory_space<smem>>
    %181 = arith.index_cast %arg0 : i32 to index
    %c16 = arith.constant 16 : index
    %182 = memref.load %arg1[%181, %c16] : memref<2x90xf32, #tpu.memory_space<smem>>
    %183 = arith.index_cast %arg0 : i32 to index
    %c17 = arith.constant 17 : index
    %184 = memref.load %arg1[%183, %c17] : memref<2x90xf32, #tpu.memory_space<smem>>
    %185 = arith.index_cast %arg0 : i32 to index
    %c18 = arith.constant 18 : index
    %186 = memref.load %arg1[%185, %c18] : memref<2x90xf32, #tpu.memory_space<smem>>
    %187 = arith.index_cast %arg0 : i32 to index
    %c19 = arith.constant 19 : index
    %188 = memref.load %arg1[%187, %c19] : memref<2x90xf32, #tpu.memory_space<smem>>
    %189 = vector.broadcast %184 : f32 to vector<16x128xf32>
    %190 = arith.minimumf %81, %189 : vector<16x128xf32>
    %191 = vector.broadcast %180 : f32 to vector<16x128xf32>
    %192 = arith.maximumf %78, %191 : vector<16x128xf32>
    %193 = arith.subf %190, %192 : vector<16x128xf32>
    %cst_55 = arith.constant 0.000000e+00 : f32
    %194 = vector.broadcast %cst_55 : f32 to vector<16x128xf32>
    %195 = arith.maximumf %193, %194 : vector<16x128xf32>
    %196 = vector.broadcast %186 : f32 to vector<16x128xf32>
    %197 = arith.minimumf %87, %196 : vector<16x128xf32>
    %198 = vector.broadcast %182 : f32 to vector<16x128xf32>
    %199 = arith.maximumf %84, %198 : vector<16x128xf32>
    %200 = arith.subf %197, %199 : vector<16x128xf32>
    %cst_56 = arith.constant 0.000000e+00 : f32
    %201 = vector.broadcast %cst_56 : f32 to vector<16x128xf32>
    %202 = arith.maximumf %200, %201 : vector<16x128xf32>
    %203 = arith.mulf %195, %202 : vector<16x128xf32>
    %204 = vector.broadcast %188 : f32 to vector<16x128xf32>
    %205 = arith.addf %90, %204 : vector<16x128xf32>
    %206 = arith.cmpf ogt, %203, %205 : vector<16x128xf32>
    %207 = arith.ori %178, %206 : vector<16x128xi1>
    %208 = arith.index_cast %arg0 : i32 to index
    %c20 = arith.constant 20 : index
    %209 = memref.load %arg1[%208, %c20] : memref<2x90xf32, #tpu.memory_space<smem>>
    %210 = arith.index_cast %arg0 : i32 to index
    %c21 = arith.constant 21 : index
    %211 = memref.load %arg1[%210, %c21] : memref<2x90xf32, #tpu.memory_space<smem>>
    %212 = arith.index_cast %arg0 : i32 to index
    %c22 = arith.constant 22 : index
    %213 = memref.load %arg1[%212, %c22] : memref<2x90xf32, #tpu.memory_space<smem>>
    %214 = arith.index_cast %arg0 : i32 to index
    %c23 = arith.constant 23 : index
    %215 = memref.load %arg1[%214, %c23] : memref<2x90xf32, #tpu.memory_space<smem>>
    %216 = arith.index_cast %arg0 : i32 to index
    %c24 = arith.constant 24 : index
    %217 = memref.load %arg1[%216, %c24] : memref<2x90xf32, #tpu.memory_space<smem>>
    %218 = vector.broadcast %213 : f32 to vector<16x128xf32>
    %219 = arith.minimumf %81, %218 : vector<16x128xf32>
    %220 = vector.broadcast %209 : f32 to vector<16x128xf32>
    %221 = arith.maximumf %78, %220 : vector<16x128xf32>
    %222 = arith.subf %219, %221 : vector<16x128xf32>
    %cst_57 = arith.constant 0.000000e+00 : f32
    %223 = vector.broadcast %cst_57 : f32 to vector<16x128xf32>
    %224 = arith.maximumf %222, %223 : vector<16x128xf32>
    %225 = vector.broadcast %215 : f32 to vector<16x128xf32>
    %226 = arith.minimumf %87, %225 : vector<16x128xf32>
    %227 = vector.broadcast %211 : f32 to vector<16x128xf32>
    %228 = arith.maximumf %84, %227 : vector<16x128xf32>
    %229 = arith.subf %226, %228 : vector<16x128xf32>
    %cst_58 = arith.constant 0.000000e+00 : f32
    %230 = vector.broadcast %cst_58 : f32 to vector<16x128xf32>
    %231 = arith.maximumf %229, %230 : vector<16x128xf32>
    %232 = arith.mulf %224, %231 : vector<16x128xf32>
    %233 = vector.broadcast %217 : f32 to vector<16x128xf32>
    %234 = arith.addf %90, %233 : vector<16x128xf32>
    %235 = arith.cmpf ogt, %232, %234 : vector<16x128xf32>
    %236 = arith.ori %207, %235 : vector<16x128xi1>
    %237 = arith.index_cast %arg0 : i32 to index
    %c25 = arith.constant 25 : index
    %238 = memref.load %arg1[%237, %c25] : memref<2x90xf32, #tpu.memory_space<smem>>
    %239 = arith.index_cast %arg0 : i32 to index
    %c26 = arith.constant 26 : index
    %240 = memref.load %arg1[%239, %c26] : memref<2x90xf32, #tpu.memory_space<smem>>
    %241 = arith.index_cast %arg0 : i32 to index
    %c27 = arith.constant 27 : index
    %242 = memref.load %arg1[%241, %c27] : memref<2x90xf32, #tpu.memory_space<smem>>
    %243 = arith.index_cast %arg0 : i32 to index
    %c28 = arith.constant 28 : index
    %244 = memref.load %arg1[%243, %c28] : memref<2x90xf32, #tpu.memory_space<smem>>
    %245 = arith.index_cast %arg0 : i32 to index
    %c29 = arith.constant 29 : index
    %246 = memref.load %arg1[%245, %c29] : memref<2x90xf32, #tpu.memory_space<smem>>
    %247 = vector.broadcast %242 : f32 to vector<16x128xf32>
    %248 = arith.minimumf %81, %247 : vector<16x128xf32>
    %249 = vector.broadcast %238 : f32 to vector<16x128xf32>
    %250 = arith.maximumf %78, %249 : vector<16x128xf32>
    %251 = arith.subf %248, %250 : vector<16x128xf32>
    %cst_59 = arith.constant 0.000000e+00 : f32
    %252 = vector.broadcast %cst_59 : f32 to vector<16x128xf32>
    %253 = arith.maximumf %251, %252 : vector<16x128xf32>
    %254 = vector.broadcast %244 : f32 to vector<16x128xf32>
    %255 = arith.minimumf %87, %254 : vector<16x128xf32>
    %256 = vector.broadcast %240 : f32 to vector<16x128xf32>
    %257 = arith.maximumf %84, %256 : vector<16x128xf32>
    %258 = arith.subf %255, %257 : vector<16x128xf32>
    %cst_60 = arith.constant 0.000000e+00 : f32
    %259 = vector.broadcast %cst_60 : f32 to vector<16x128xf32>
    %260 = arith.maximumf %258, %259 : vector<16x128xf32>
    %261 = arith.mulf %253, %260 : vector<16x128xf32>
    %262 = vector.broadcast %246 : f32 to vector<16x128xf32>
    %263 = arith.addf %90, %262 : vector<16x128xf32>
    %264 = arith.cmpf ogt, %261, %263 : vector<16x128xf32>
    %265 = arith.ori %236, %264 : vector<16x128xi1>
    %c0_61 = arith.constant 0 : index
    %c4_62 = arith.constant 4 : index
    %266 = arith.index_cast %45 : i32 to index
    %c0_63 = arith.constant 0 : index
    %267 = vector.load %arg2[%c0_61, %c4_62, %266, %c0_63] : memref<1x5x48x128xf32, #tpu.memory_space<vmem>>, vector<1x1x16x128xf32>
    %268 = vector.shape_cast %267 : vector<1x1x16x128xf32> to vector<16x128xf32>
    %c0_64 = arith.constant 0 : index
    %269 = arith.index_cast %45 : i32 to index
    %c0_65 = arith.constant 0 : index
    %270 = vector.load %arg3[%c0_64, %269, %c0_65] : memref<1x48x128xf32, #tpu.memory_space<vmem>>, vector<1x16x128xf32>
    %271 = vector.shape_cast %270 : vector<1x16x128xf32> to vector<16x128xf32>
    %cst_66 = arith.constant 1.000000e+00 : f32
    %272 = vector.broadcast %cst_66 : f32 to vector<16x128xf32>
    %273 = arith.select %265, %271, %272 : vector<16x128xi1>, vector<16x128xf32>
    %274 = arith.mulf %268, %273 : vector<16x128xf32>
    %275 = math.log %274 : vector<16x128xf32>
    %cst_67 = arith.constant -1.000000e+02 : f32
    %276 = vector.broadcast %cst_67 : f32 to vector<16x128xf32>
    %277 = arith.maximumf %275, %276 : vector<16x128xf32>
    %cst_68 = arith.constant 1.000000e+00 : f32
    %278 = vector.broadcast %cst_68 : f32 to vector<16x128xf32>
    %279 = arith.subf %278, %274 : vector<16x128xf32>
    %280 = math.log %279 : vector<16x128xf32>
    %cst_69 = arith.constant -1.000000e+02 : f32
    %281 = vector.broadcast %cst_69 : f32 to vector<16x128xf32>
    %282 = arith.maximumf %280, %281 : vector<16x128xf32>
    %283 = arith.mulf %271, %277 : vector<16x128xf32>
    %cst_70 = arith.constant 1.000000e+00 : f32
    %284 = vector.broadcast %cst_70 : f32 to vector<16x128xf32>
    %285 = arith.subf %284, %271 : vector<16x128xf32>
    %286 = arith.mulf %285, %282 : vector<16x128xf32>
    %287 = arith.addf %283, %286 : vector<16x128xf32>
    %288 = arith.subf %42, %287 : vector<16x128xf32>
    %c1_i32 = arith.constant 1 : i32
    %cst_71 = arith.constant 1.000000e+00 : f32
    %289 = vector.broadcast %cst_71 : f32 to vector<16x128xf32>
    %290 = arith.mulf %289, %288 : vector<16x128xf32>
    %291 = arith.addf %41, %290 : vector<16x128xf32>
    %c0_72 = arith.constant 0 : index
    %c0_73 = arith.constant 0 : index
    %c0_74 = arith.constant 0 : index
    %292 = vector.load %arg8[%c0_72, %c0_73, %c0_74] : memref<1x16x128xf32, #tpu.memory_space<vmem>>, vector<1x16x128xf32>
    %293 = vector.shape_cast %292 : vector<1x16x128xf32> to vector<16x128xf32>
    %294 = vector.shape_cast %291 : vector<16x128xf32> to vector<1x16x128xf32>
    tpu.vector_store %arg8[%c0_72, %c0_73, %c0_74], %294 {strides = array<i32>} : memref<1x16x128xf32, #tpu.memory_space<vmem>>, vector<1x16x128xf32>,
    %c0_75 = arith.constant 0 : index
    %c0_76 = arith.constant 0 : index
    %c0_77 = arith.constant 0 : index
    %295 = vector.load %arg8[%c0_75, %c0_76, %c0_77] : memref<1x16x128xf32, #tpu.memory_space<vmem>>, vector<1x16x128xf32>
    %296 = vector.shape_cast %295 : vector<1x16x128xf32> to vector<16x128xf32>
    %cst_78 = arith.constant 0.000000e+00 : f32
    %297 = vector.broadcast %cst_78 : f32 to vector<16x128xf32>
    %c0_i32_79 = arith.constant 0 : i32
    %c16_i32_80 = arith.constant 16 : i32
    %298 = arith.muli %c0_i32_79, %c16_i32_80 : i32
    %c16_i32_81 = arith.constant 16 : i32
    %299 = arith.addi %c16_i32_81, %298 : i32
    %300 = tpu.assume_multiple %299, 16 : i32
    %c0_82 = arith.constant 0 : index
    %301 = arith.index_cast %300 : i32 to index
    %c0_83 = arith.constant 0 : index
    %302 = vector.load %arg4[%c0_82, %301, %c0_83] : memref<4x48x128xf32, #tpu.memory_space<vmem>>, vector<1x16x128xf32>
    %303 = vector.shape_cast %302 : vector<1x16x128xf32> to vector<16x128xf32>
    %c1_84 = arith.constant 1 : index
    %304 = arith.index_cast %300 : i32 to index
    %c0_85 = arith.constant 0 : index
    %305 = vector.load %arg4[%c1_84, %304, %c0_85] : memref<4x48x128xf32, #tpu.memory_space<vmem>>, vector<1x16x128xf32>
    %306 = vector.shape_cast %305 : vector<1x16x128xf32> to vector<16x128xf32>
    %c2_86 = arith.constant 2 : index
    %307 = arith.index_cast %300 : i32 to index
    %c0_87 = arith.constant 0 : index
    %308 = vector.load %arg4[%c2_86, %307, %c0_87] : memref<4x48x128xf32, #tpu.memory_space<vmem>>, vector<1x16x128xf32>
    %309 = vector.shape_cast %308 : vector<1x16x128xf32> to vector<16x128xf32>
    %c3_88 = arith.constant 3 : index
    %310 = arith.index_cast %300 : i32 to index
    %c0_89 = arith.constant 0 : index
    %311 = vector.load %arg4[%c3_88, %310, %c0_89] : memref<4x48x128xf32, #tpu.memory_space<vmem>>, vector<1x16x128xf32>
    %312 = vector.shape_cast %311 : vector<1x16x128xf32> to vector<16x128xf32>
    %c0_90 = arith.constant 0 : index
    %c0_91 = arith.constant 0 : index
    %313 = arith.index_cast %300 : i32 to index
    %c0_92 = arith.constant 0 : index
    %314 = vector.load %arg2[%c0_90, %c0_91, %313, %c0_92] : memref<1x5x48x128xf32, #tpu.memory_space<vmem>>, vector<1x1x16x128xf32>
    %315 = vector.shape_cast %314 : vector<1x1x16x128xf32> to vector<16x128xf32>
    %316 = arith.addf %315, %303 : vector<16x128xf32>
    %c0_93 = arith.constant 0 : index
    %c1_94 = arith.constant 1 : index
    %317 = arith.index_cast %300 : i32 to index
    %c0_95 = arith.constant 0 : index
    %318 = vector.load %arg2[%c0_93, %c1_94, %317, %c0_95] : memref<1x5x48x128xf32, #tpu.memory_space<vmem>>, vector<1x1x16x128xf32>
    %319 = vector.shape_cast %318 : vector<1x1x16x128xf32> to vector<16x128xf32>
    %320 = arith.addf %319, %306 : vector<16x128xf32>
    %c0_96 = arith.constant 0 : index
    %c2_97 = arith.constant 2 : index
    %321 = arith.index_cast %300 : i32 to index
    %c0_98 = arith.constant 0 : index
    %322 = vector.load %arg2[%c0_96, %c2_97, %321, %c0_98] : memref<1x5x48x128xf32, #tpu.memory_space<vmem>>, vector<1x1x16x128xf32>
    %323 = vector.shape_cast %322 : vector<1x1x16x128xf32> to vector<16x128xf32>
    %324 = math.exp %323 : vector<16x128xf32>
    %325 = arith.mulf %324, %309 : vector<16x128xf32>
    %c0_99 = arith.constant 0 : index
    %c3_100 = arith.constant 3 : index
    %326 = arith.index_cast %300 : i32 to index
    %c0_101 = arith.constant 0 : index
    %327 = vector.load %arg2[%c0_99, %c3_100, %326, %c0_101] : memref<1x5x48x128xf32, #tpu.memory_space<vmem>>, vector<1x1x16x128xf32>
    %328 = vector.shape_cast %327 : vector<1x1x16x128xf32> to vector<16x128xf32>
    %329 = math.exp %328 : vector<16x128xf32>
    %330 = arith.mulf %329, %312 : vector<16x128xf32>
    %cst_102 = arith.constant 5.000000e-01 : f32
    %331 = vector.broadcast %cst_102 : f32 to vector<16x128xf32>
    %332 = arith.mulf %331, %325 : vector<16x128xf32>
    %333 = arith.subf %316, %332 : vector<16x128xf32>
    %cst_103 = arith.constant 5.000000e-01 : f32
    %334 = vector.broadcast %cst_103 : f32 to vector<16x128xf32>
    %335 = arith.mulf %334, %325 : vector<16x128xf32>
    %336 = arith.addf %316, %335 : vector<16x128xf32>
    %cst_104 = arith.constant 5.000000e-01 : f32
    %337 = vector.broadcast %cst_104 : f32 to vector<16x128xf32>
    %338 = arith.mulf %337, %330 : vector<16x128xf32>
    %339 = arith.subf %320, %338 : vector<16x128xf32>
    %cst_105 = arith.constant 5.000000e-01 : f32
    %340 = vector.broadcast %cst_105 : f32 to vector<16x128xf32>
    %341 = arith.mulf %340, %330 : vector<16x128xf32>
    %342 = arith.addf %320, %341 : vector<16x128xf32>
    %343 = arith.mulf %325, %330 : vector<16x128xf32>
    %cst_106 = arith.constant 0.411764711 : f32
    %344 = vector.broadcast %cst_106 : f32 to vector<16x128xf32>
    %345 = arith.mulf %344, %343 : vector<16x128xf32>
    %false_107 = arith.constant false
    %346 = vector.broadcast %false_107 : i1 to vector<16x128xi1>
    %347 = arith.index_cast %arg0 : i32 to index
    %c30 = arith.constant 30 : index
    %348 = memref.load %arg1[%347, %c30] : memref<2x90xf32, #tpu.memory_space<smem>>
    %349 = arith.index_cast %arg0 : i32 to index
    %c31 = arith.constant 31 : index
    %350 = memref.load %arg1[%349, %c31] : memref<2x90xf32, #tpu.memory_space<smem>>
    %351 = arith.index_cast %arg0 : i32 to index
    %c32 = arith.constant 32 : index
    %352 = memref.load %arg1[%351, %c32] : memref<2x90xf32, #tpu.memory_space<smem>>
    %353 = arith.index_cast %arg0 : i32 to index
    %c33 = arith.constant 33 : index
    %354 = memref.load %arg1[%353, %c33] : memref<2x90xf32, #tpu.memory_space<smem>>
    %355 = arith.index_cast %arg0 : i32 to index
    %c34 = arith.constant 34 : index
    %356 = memref.load %arg1[%355, %c34] : memref<2x90xf32, #tpu.memory_space<smem>>
    %357 = vector.broadcast %352 : f32 to vector<16x128xf32>
    %358 = arith.minimumf %336, %357 : vector<16x128xf32>
    %359 = vector.broadcast %348 : f32 to vector<16x128xf32>
    %360 = arith.maximumf %333, %359 : vector<16x128xf32>
    %361 = arith.subf %358, %360 : vector<16x128xf32>
    %cst_108 = arith.constant 0.000000e+00 : f32
    %362 = vector.broadcast %cst_108 : f32 to vector<16x128xf32>
    %363 = arith.maximumf %361, %362 : vector<16x128xf32>
    %364 = vector.broadcast %354 : f32 to vector<16x128xf32>
    %365 = arith.minimumf %342, %364 : vector<16x128xf32>
    %366 = vector.broadcast %350 : f32 to vector<16x128xf32>
    %367 = arith.maximumf %339, %366 : vector<16x128xf32>
    %368 = arith.subf %365, %367 : vector<16x128xf32>
    %cst_109 = arith.constant 0.000000e+00 : f32
    %369 = vector.broadcast %cst_109 : f32 to vector<16x128xf32>
    %370 = arith.maximumf %368, %369 : vector<16x128xf32>
    %371 = arith.mulf %363, %370 : vector<16x128xf32>
    %372 = vector.broadcast %356 : f32 to vector<16x128xf32>
    %373 = arith.addf %345, %372 : vector<16x128xf32>
    %374 = arith.cmpf ogt, %371, %373 : vector<16x128xf32>
    %375 = arith.ori %346, %374 : vector<16x128xi1>
    %376 = arith.index_cast %arg0 : i32 to index
    %c35 = arith.constant 35 : index
    %377 = memref.load %arg1[%376, %c35] : memref<2x90xf32, #tpu.memory_space<smem>>
    %378 = arith.index_cast %arg0 : i32 to index
    %c36 = arith.constant 36 : index
    %379 = memref.load %arg1[%378, %c36] : memref<2x90xf32, #tpu.memory_space<smem>>
    %380 = arith.index_cast %arg0 : i32 to index
    %c37 = arith.constant 37 : index
    %381 = memref.load %arg1[%380, %c37] : memref<2x90xf32, #tpu.memory_space<smem>>
    %382 = arith.index_cast %arg0 : i32 to index
    %c38 = arith.constant 38 : index
    %383 = memref.load %arg1[%382, %c38] : memref<2x90xf32, #tpu.memory_space<smem>>
    %384 = arith.index_cast %arg0 : i32 to index
    %c39 = arith.constant 39 : index
    %385 = memref.load %arg1[%384, %c39] : memref<2x90xf32, #tpu.memory_space<smem>>
    %386 = vector.broadcast %381 : f32 to vector<16x128xf32>
    %387 = arith.minimumf %336, %386 : vector<16x128xf32>
    %388 = vector.broadcast %377 : f32 to vector<16x128xf32>
    %389 = arith.maximumf %333, %388 : vector<16x128xf32>
    %390 = arith.subf %387, %389 : vector<16x128xf32>
    %cst_110 = arith.constant 0.000000e+00 : f32
    %391 = vector.broadcast %cst_110 : f32 to vector<16x128xf32>
    %392 = arith.maximumf %390, %391 : vector<16x128xf32>
    %393 = vector.broadcast %383 : f32 to vector<16x128xf32>
    %394 = arith.minimumf %342, %393 : vector<16x128xf32>
    %395 = vector.broadcast %379 : f32 to vector<16x128xf32>
    %396 = arith.maximumf %339, %395 : vector<16x128xf32>
    %397 = arith.subf %394, %396 : vector<16x128xf32>
    %cst_111 = arith.constant 0.000000e+00 : f32
    %398 = vector.broadcast %cst_111 : f32 to vector<16x128xf32>
    %399 = arith.maximumf %397, %398 : vector<16x128xf32>
    %400 = arith.mulf %392, %399 : vector<16x128xf32>
    %401 = vector.broadcast %385 : f32 to vector<16x128xf32>
    %402 = arith.addf %345, %401 : vector<16x128xf32>
    %403 = arith.cmpf ogt, %400, %402 : vector<16x128xf32>
    %404 = arith.ori %375, %403 : vector<16x128xi1>
    %405 = arith.index_cast %arg0 : i32 to index
    %c40 = arith.constant 40 : index
    %406 = memref.load %arg1[%405, %c40] : memref<2x90xf32, #tpu.memory_space<smem>>
    %407 = arith.index_cast %arg0 : i32 to index
    %c41 = arith.constant 41 : index
    %408 = memref.load %arg1[%407, %c41] : memref<2x90xf32, #tpu.memory_space<smem>>
    %409 = arith.index_cast %arg0 : i32 to index
    %c42 = arith.constant 42 : index
    %410 = memref.load %arg1[%409, %c42] : memref<2x90xf32, #tpu.memory_space<smem>>
    %411 = arith.index_cast %arg0 : i32 to index
    %c43 = arith.constant 43 : index
    %412 = memref.load %arg1[%411, %c43] : memref<2x90xf32, #tpu.memory_space<smem>>
    %413 = arith.index_cast %arg0 : i32 to index
    %c44 = arith.constant 44 : index
    %414 = memref.load %arg1[%413, %c44] : memref<2x90xf32, #tpu.memory_space<smem>>
    %415 = vector.broadcast %410 : f32 to vector<16x128xf32>
    %416 = arith.minimumf %336, %415 : vector<16x128xf32>
    %417 = vector.broadcast %406 : f32 to vector<16x128xf32>
    %418 = arith.maximumf %333, %417 : vector<16x128xf32>
    %419 = arith.subf %416, %418 : vector<16x128xf32>
    %cst_112 = arith.constant 0.000000e+00 : f32
    %420 = vector.broadcast %cst_112 : f32 to vector<16x128xf32>
    %421 = arith.maximumf %419, %420 : vector<16x128xf32>
    %422 = vector.broadcast %412 : f32 to vector<16x128xf32>
    %423 = arith.minimumf %342, %422 : vector<16x128xf32>
    %424 = vector.broadcast %408 : f32 to vector<16x128xf32>
    %425 = arith.maximumf %339, %424 : vector<16x128xf32>
    %426 = arith.subf %423, %425 : vector<16x128xf32>
    %cst_113 = arith.constant 0.000000e+00 : f32
    %427 = vector.broadcast %cst_113 : f32 to vector<16x128xf32>
    %428 = arith.maximumf %426, %427 : vector<16x128xf32>
    %429 = arith.mulf %421, %428 : vector<16x128xf32>
    %430 = vector.broadcast %414 : f32 to vector<16x128xf32>
    %431 = arith.addf %345, %430 : vector<16x128xf32>
    %432 = arith.cmpf ogt, %429, %431 : vector<16x128xf32>
    %433 = arith.ori %404, %432 : vector<16x128xi1>
    %434 = arith.index_cast %arg0 : i32 to index
    %c45 = arith.constant 45 : index
    %435 = memref.load %arg1[%434, %c45] : memref<2x90xf32, #tpu.memory_space<smem>>
    %436 = arith.index_cast %arg0 : i32 to index
    %c46 = arith.constant 46 : index
    %437 = memref.load %arg1[%436, %c46] : memref<2x90xf32, #tpu.memory_space<smem>>
    %438 = arith.index_cast %arg0 : i32 to index
    %c47 = arith.constant 47 : index
    %439 = memref.load %arg1[%438, %c47] : memref<2x90xf32, #tpu.memory_space<smem>>
    %440 = arith.index_cast %arg0 : i32 to index
    %c48 = arith.constant 48 : index
    %441 = memref.load %arg1[%440, %c48] : memref<2x90xf32, #tpu.memory_space<smem>>
    %442 = arith.index_cast %arg0 : i32 to index
    %c49 = arith.constant 49 : index
    %443 = memref.load %arg1[%442, %c49] : memref<2x90xf32, #tpu.memory_space<smem>>
    %444 = vector.broadcast %439 : f32 to vector<16x128xf32>
    %445 = arith.minimumf %336, %444 : vector<16x128xf32>
    %446 = vector.broadcast %435 : f32 to vector<16x128xf32>
    %447 = arith.maximumf %333, %446 : vector<16x128xf32>
    %448 = arith.subf %445, %447 : vector<16x128xf32>
    %cst_114 = arith.constant 0.000000e+00 : f32
    %449 = vector.broadcast %cst_114 : f32 to vector<16x128xf32>
    %450 = arith.maximumf %448, %449 : vector<16x128xf32>
    %451 = vector.broadcast %441 : f32 to vector<16x128xf32>
    %452 = arith.minimumf %342, %451 : vector<16x128xf32>
    %453 = vector.broadcast %437 : f32 to vector<16x128xf32>
    %454 = arith.maximumf %339, %453 : vector<16x128xf32>
    %455 = arith.subf %452, %454 : vector<16x128xf32>
    %cst_115 = arith.constant 0.000000e+00 : f32
    %456 = vector.broadcast %cst_115 : f32 to vector<16x128xf32>
    %457 = arith.maximumf %455, %456 : vector<16x128xf32>
    %458 = arith.mulf %450, %457 : vector<16x128xf32>
    %459 = vector.broadcast %443 : f32 to vector<16x128xf32>
    %460 = arith.addf %345, %459 : vector<16x128xf32>
    %461 = arith.cmpf ogt, %458, %460 : vector<16x128xf32>
    %462 = arith.ori %433, %461 : vector<16x128xi1>
    %463 = arith.index_cast %arg0 : i32 to index
    %c50 = arith.constant 50 : index
    %464 = memref.load %arg1[%463, %c50] : memref<2x90xf32, #tpu.memory_space<smem>>
    %465 = arith.index_cast %arg0 : i32 to index
    %c51 = arith.constant 51 : index
    %466 = memref.load %arg1[%465, %c51] : memref<2x90xf32, #tpu.memory_space<smem>>
    %467 = arith.index_cast %arg0 : i32 to index
    %c52 = arith.constant 52 : index
    %468 = memref.load %arg1[%467, %c52] : memref<2x90xf32, #tpu.memory_space<smem>>
    %469 = arith.index_cast %arg0 : i32 to index
    %c53 = arith.constant 53 : index
    %470 = memref.load %arg1[%469, %c53] : memref<2x90xf32, #tpu.memory_space<smem>>
    %471 = arith.index_cast %arg0 : i32 to index
    %c54 = arith.constant 54 : index
    %472 = memref.load %arg1[%471, %c54] : memref<2x90xf32, #tpu.memory_space<smem>>
    %473 = vector.broadcast %468 : f32 to vector<16x128xf32>
    %474 = arith.minimumf %336, %473 : vector<16x128xf32>
    %475 = vector.broadcast %464 : f32 to vector<16x128xf32>
    %476 = arith.maximumf %333, %475 : vector<16x128xf32>
    %477 = arith.subf %474, %476 : vector<16x128xf32>
    %cst_116 = arith.constant 0.000000e+00 : f32
    %478 = vector.broadcast %cst_116 : f32 to vector<16x128xf32>
    %479 = arith.maximumf %477, %478 : vector<16x128xf32>
    %480 = vector.broadcast %470 : f32 to vector<16x128xf32>
    %481 = arith.minimumf %342, %480 : vector<16x128xf32>
    %482 = vector.broadcast %466 : f32 to vector<16x128xf32>
    %483 = arith.maximumf %339, %482 : vector<16x128xf32>
    %484 = arith.subf %481, %483 : vector<16x128xf32>
    %cst_117 = arith.constant 0.000000e+00 : f32
    %485 = vector.broadcast %cst_117 : f32 to vector<16x128xf32>
    %486 = arith.maximumf %484, %485 : vector<16x128xf32>
    %487 = arith.mulf %479, %486 : vector<16x128xf32>
    %488 = vector.broadcast %472 : f32 to vector<16x128xf32>
    %489 = arith.addf %345, %488 : vector<16x128xf32>
    %490 = arith.cmpf ogt, %487, %489 : vector<16x128xf32>
    %491 = arith.ori %462, %490 : vector<16x128xi1>
    %492 = arith.index_cast %arg0 : i32 to index
    %c55 = arith.constant 55 : index
    %493 = memref.load %arg1[%492, %c55] : memref<2x90xf32, #tpu.memory_space<smem>>
    %494 = arith.index_cast %arg0 : i32 to index
    %c56 = arith.constant 56 : index
    %495 = memref.load %arg1[%494, %c56] : memref<2x90xf32, #tpu.memory_space<smem>>
    %496 = arith.index_cast %arg0 : i32 to index
    %c57 = arith.constant 57 : index
    %497 = memref.load %arg1[%496, %c57] : memref<2x90xf32, #tpu.memory_space<smem>>
    %498 = arith.index_cast %arg0 : i32 to index
    %c58 = arith.constant 58 : index
    %499 = memref.load %arg1[%498, %c58] : memref<2x90xf32, #tpu.memory_space<smem>>
    %500 = arith.index_cast %arg0 : i32 to index
    %c59 = arith.constant 59 : index
    %501 = memref.load %arg1[%500, %c59] : memref<2x90xf32, #tpu.memory_space<smem>>
    %502 = vector.broadcast %497 : f32 to vector<16x128xf32>
    %503 = arith.minimumf %336, %502 : vector<16x128xf32>
    %504 = vector.broadcast %493 : f32 to vector<16x128xf32>
    %505 = arith.maximumf %333, %504 : vector<16x128xf32>
    %506 = arith.subf %503, %505 : vector<16x128xf32>
    %cst_118 = arith.constant 0.000000e+00 : f32
    %507 = vector.broadcast %cst_118 : f32 to vector<16x128xf32>
    %508 = arith.maximumf %506, %507 : vector<16x128xf32>
    %509 = vector.broadcast %499 : f32 to vector<16x128xf32>
    %510 = arith.minimumf %342, %509 : vector<16x128xf32>
    %511 = vector.broadcast %495 : f32 to vector<16x128xf32>
    %512 = arith.maximumf %339, %511 : vector<16x128xf32>
    %513 = arith.subf %510, %512 : vector<16x128xf32>
    %cst_119 = arith.constant 0.000000e+00 : f32
    %514 = vector.broadcast %cst_119 : f32 to vector<16x128xf32>
    %515 = arith.maximumf %513, %514 : vector<16x128xf32>
    %516 = arith.mulf %508, %515 : vector<16x128xf32>
    %517 = vector.broadcast %501 : f32 to vector<16x128xf32>
    %518 = arith.addf %345, %517 : vector<16x128xf32>
    %519 = arith.cmpf ogt, %516, %518 : vector<16x128xf32>
    %520 = arith.ori %491, %519 : vector<16x128xi1>
    %c0_120 = arith.constant 0 : index
    %c4_121 = arith.constant 4 : index
    %521 = arith.index_cast %300 : i32 to index
    %c0_122 = arith.constant 0 : index
    %522 = vector.load %arg2[%c0_120, %c4_121, %521, %c0_122] : memref<1x5x48x128xf32, #tpu.memory_space<vmem>>, vector<1x1x16x128xf32>
    %523 = vector.shape_cast %522 : vector<1x1x16x128xf32> to vector<16x128xf32>
    %c0_123 = arith.constant 0 : index
    %524 = arith.index_cast %300 : i32 to index
    %c0_124 = arith.constant 0 : index
    %525 = vector.load %arg3[%c0_123, %524, %c0_124] : memref<1x48x128xf32, #tpu.memory_space<vmem>>, vector<1x16x128xf32>
    %526 = vector.shape_cast %525 : vector<1x16x128xf32> to vector<16x128xf32>
    %cst_125 = arith.constant 1.000000e+00 : f32
    %527 = vector.broadcast %cst_125 : f32 to vector<16x128xf32>
    %528 = arith.select %520, %526, %527 : vector<16x128xi1>, vector<16x128xf32>
    %529 = arith.mulf %523, %528 : vector<16x128xf32>
    %530 = math.log %529 : vector<16x128xf32>
    %cst_126 = arith.constant -1.000000e+02 : f32
    %531 = vector.broadcast %cst_126 : f32 to vector<16x128xf32>
    %532 = arith.maximumf %530, %531 : vector<16x128xf32>
    %cst_127 = arith.constant 1.000000e+00 : f32
    %533 = vector.broadcast %cst_127 : f32 to vector<16x128xf32>
    %534 = arith.subf %533, %529 : vector<16x128xf32>
    %535 = math.log %534 : vector<16x128xf32>
    %cst_128 = arith.constant -1.000000e+02 : f32
    %536 = vector.broadcast %cst_128 : f32 to vector<16x128xf32>
    %537 = arith.maximumf %535, %536 : vector<16x128xf32>
    %538 = arith.mulf %526, %532 : vector<16x128xf32>
    %cst_129 = arith.constant 1.000000e+00 : f32
    %539 = vector.broadcast %cst_129 : f32 to vector<16x128xf32>
    %540 = arith.subf %539, %526 : vector<16x128xf32>
    %541 = arith.mulf %540, %537 : vector<16x128xf32>
    %542 = arith.addf %538, %541 : vector<16x128xf32>
    %543 = arith.subf %297, %542 : vector<16x128xf32>
    %c1_i32_130 = arith.constant 1 : i32
    %cst_131 = arith.constant 1.000000e+00 : f32
    %544 = vector.broadcast %cst_131 : f32 to vector<16x128xf32>
    %545 = arith.mulf %544, %543 : vector<16x128xf32>
    %546 = arith.addf %296, %545 : vector<16x128xf32>
    %c0_132 = arith.constant 0 : index
    %c0_133 = arith.constant 0 : index
    %c0_134 = arith.constant 0 : index
    %547 = vector.load %arg8[%c0_132, %c0_133, %c0_134] : memref<1x16x128xf32, #tpu.memory_space<vmem>>, vector<1x16x128xf32>
    %548 = vector.shape_cast %547 : vector<1x16x128xf32> to vector<16x128xf32>
    %549 = vector.shape_cast %546 : vector<16x128xf32> to vector<1x16x128xf32>
    tpu.vector_store %arg8[%c0_132, %c0_133, %c0_134], %549 {strides = array<i32>} : memref<1x16x128xf32, #tpu.memory_space<vmem>>, vector<1x16x128xf32>,
    %c0_135 = arith.constant 0 : index
    %c0_136 = arith.constant 0 : index
    %c0_137 = arith.constant 0 : index
    %550 = vector.load %arg8[%c0_135, %c0_136, %c0_137] : memref<1x16x128xf32, #tpu.memory_space<vmem>>, vector<1x16x128xf32>
    %551 = vector.shape_cast %550 : vector<1x16x128xf32> to vector<16x128xf32>
    %cst_138 = arith.constant 0.000000e+00 : f32
    %552 = vector.broadcast %cst_138 : f32 to vector<16x128xf32>
    %c0_i32_139 = arith.constant 0 : i32
    %c16_i32_140 = arith.constant 16 : i32
    %553 = arith.muli %c0_i32_139, %c16_i32_140 : i32
    %c32_i32 = arith.constant 32 : i32
    %554 = arith.addi %c32_i32, %553 : i32
    %555 = tpu.assume_multiple %554, 16 : i32
    %c0_141 = arith.constant 0 : index
    %556 = arith.index_cast %555 : i32 to index
    %c0_142 = arith.constant 0 : index
    %557 = vector.load %arg4[%c0_141, %556, %c0_142] : memref<4x48x128xf32, #tpu.memory_space<vmem>>, vector<1x16x128xf32>
    %558 = vector.shape_cast %557 : vector<1x16x128xf32> to vector<16x128xf32>
    %c1_143 = arith.constant 1 : index
    %559 = arith.index_cast %555 : i32 to index
    %c0_144 = arith.constant 0 : index
    %560 = vector.load %arg4[%c1_143, %559, %c0_144] : memref<4x48x128xf32, #tpu.memory_space<vmem>>, vector<1x16x128xf32>
    %561 = vector.shape_cast %560 : vector<1x16x128xf32> to vector<16x128xf32>
    %c2_145 = arith.constant 2 : index
    %562 = arith.index_cast %555 : i32 to index
    %c0_146 = arith.constant 0 : index
    %563 = vector.load %arg4[%c2_145, %562, %c0_146] : memref<4x48x128xf32, #tpu.memory_space<vmem>>, vector<1x16x128xf32>
    %564 = vector.shape_cast %563 : vector<1x16x128xf32> to vector<16x128xf32>
    %c3_147 = arith.constant 3 : index
    %565 = arith.index_cast %555 : i32 to index
    %c0_148 = arith.constant 0 : index
    %566 = vector.load %arg4[%c3_147, %565, %c0_148] : memref<4x48x128xf32, #tpu.memory_space<vmem>>, vector<1x16x128xf32>
    %567 = vector.shape_cast %566 : vector<1x16x128xf32> to vector<16x128xf32>
    %c0_149 = arith.constant 0 : index
    %c0_150 = arith.constant 0 : index
    %568 = arith.index_cast %555 : i32 to index
    %c0_151 = arith.constant 0 : index
    %569 = vector.load %arg2[%c0_149, %c0_150, %568, %c0_151] : memref<1x5x48x128xf32, #tpu.memory_space<vmem>>, vector<1x1x16x128xf32>
    %570 = vector.shape_cast %569 : vector<1x1x16x128xf32> to vector<16x128xf32>
    %571 = arith.addf %570, %558 : vector<16x128xf32>
    %c0_152 = arith.constant 0 : index
    %c1_153 = arith.constant 1 : index
    %572 = arith.index_cast %555 : i32 to index
    %c0_154 = arith.constant 0 : index
    %573 = vector.load %arg2[%c0_152, %c1_153, %572, %c0_154] : memref<1x5x48x128xf32, #tpu.memory_space<vmem>>, vector<1x1x16x128xf32>
    %574 = vector.shape_cast %573 : vector<1x1x16x128xf32> to vector<16x128xf32>
    %575 = arith.addf %574, %561 : vector<16x128xf32>
    %c0_155 = arith.constant 0 : index
    %c2_156 = arith.constant 2 : index
    %576 = arith.index_cast %555 : i32 to index
    %c0_157 = arith.constant 0 : index
    %577 = vector.load %arg2[%c0_155, %c2_156, %576, %c0_157] : memref<1x5x48x128xf32, #tpu.memory_space<vmem>>, vector<1x1x16x128xf32>
    %578 = vector.shape_cast %577 : vector<1x1x16x128xf32> to vector<16x128xf32>
    %579 = math.exp %578 : vector<16x128xf32>
    %580 = arith.mulf %579, %564 : vector<16x128xf32>
    %c0_158 = arith.constant 0 : index
    %c3_159 = arith.constant 3 : index
    %581 = arith.index_cast %555 : i32 to index
    %c0_160 = arith.constant 0 : index
    %582 = vector.load %arg2[%c0_158, %c3_159, %581, %c0_160] : memref<1x5x48x128xf32, #tpu.memory_space<vmem>>, vector<1x1x16x128xf32>
    %583 = vector.shape_cast %582 : vector<1x1x16x128xf32> to vector<16x128xf32>
    %584 = math.exp %583 : vector<16x128xf32>
    %585 = arith.mulf %584, %567 : vector<16x128xf32>
    %cst_161 = arith.constant 5.000000e-01 : f32
    %586 = vector.broadcast %cst_161 : f32 to vector<16x128xf32>
    %587 = arith.mulf %586, %580 : vector<16x128xf32>
    %588 = arith.subf %571, %587 : vector<16x128xf32>
    %cst_162 = arith.constant 5.000000e-01 : f32
    %589 = vector.broadcast %cst_162 : f32 to vector<16x128xf32>
    %590 = arith.mulf %589, %580 : vector<16x128xf32>
    %591 = arith.addf %571, %590 : vector<16x128xf32>
    %cst_163 = arith.constant 5.000000e-01 : f32
    %592 = vector.broadcast %cst_163 : f32 to vector<16x128xf32>
    %593 = arith.mulf %592, %585 : vector<16x128xf32>
    %594 = arith.subf %575, %593 : vector<16x128xf32>
    %cst_164 = arith.constant 5.000000e-01 : f32
    %595 = vector.broadcast %cst_164 : f32 to vector<16x128xf32>
    %596 = arith.mulf %595, %585 : vector<16x128xf32>
    %597 = arith.addf %575, %596 : vector<16x128xf32>
    %598 = arith.mulf %580, %585 : vector<16x128xf32>
    %cst_165 = arith.constant 0.411764711 : f32
    %599 = vector.broadcast %cst_165 : f32 to vector<16x128xf32>
    %600 = arith.mulf %599, %598 : vector<16x128xf32>
    %false_166 = arith.constant false
    %601 = vector.broadcast %false_166 : i1 to vector<16x128xi1>
    %602 = arith.index_cast %arg0 : i32 to index
    %c60 = arith.constant 60 : index
    %603 = memref.load %arg1[%602, %c60] : memref<2x90xf32, #tpu.memory_space<smem>>
    %604 = arith.index_cast %arg0 : i32 to index
    %c61 = arith.constant 61 : index
    %605 = memref.load %arg1[%604, %c61] : memref<2x90xf32, #tpu.memory_space<smem>>
    %606 = arith.index_cast %arg0 : i32 to index
    %c62 = arith.constant 62 : index
    %607 = memref.load %arg1[%606, %c62] : memref<2x90xf32, #tpu.memory_space<smem>>
    %608 = arith.index_cast %arg0 : i32 to index
    %c63 = arith.constant 63 : index
    %609 = memref.load %arg1[%608, %c63] : memref<2x90xf32, #tpu.memory_space<smem>>
    %610 = arith.index_cast %arg0 : i32 to index
    %c64 = arith.constant 64 : index
    %611 = memref.load %arg1[%610, %c64] : memref<2x90xf32, #tpu.memory_space<smem>>
    %612 = vector.broadcast %607 : f32 to vector<16x128xf32>
    %613 = arith.minimumf %591, %612 : vector<16x128xf32>
    %614 = vector.broadcast %603 : f32 to vector<16x128xf32>
    %615 = arith.maximumf %588, %614 : vector<16x128xf32>
    %616 = arith.subf %613, %615 : vector<16x128xf32>
    %cst_167 = arith.constant 0.000000e+00 : f32
    %617 = vector.broadcast %cst_167 : f32 to vector<16x128xf32>
    %618 = arith.maximumf %616, %617 : vector<16x128xf32>
    %619 = vector.broadcast %609 : f32 to vector<16x128xf32>
    %620 = arith.minimumf %597, %619 : vector<16x128xf32>
    %621 = vector.broadcast %605 : f32 to vector<16x128xf32>
    %622 = arith.maximumf %594, %621 : vector<16x128xf32>
    %623 = arith.subf %620, %622 : vector<16x128xf32>
    %cst_168 = arith.constant 0.000000e+00 : f32
    %624 = vector.broadcast %cst_168 : f32 to vector<16x128xf32>
    %625 = arith.maximumf %623, %624 : vector<16x128xf32>
    %626 = arith.mulf %618, %625 : vector<16x128xf32>
    %627 = vector.broadcast %611 : f32 to vector<16x128xf32>
    %628 = arith.addf %600, %627 : vector<16x128xf32>
    %629 = arith.cmpf ogt, %626, %628 : vector<16x128xf32>
    %630 = arith.ori %601, %629 : vector<16x128xi1>
    %631 = arith.index_cast %arg0 : i32 to index
    %c65 = arith.constant 65 : index
    %632 = memref.load %arg1[%631, %c65] : memref<2x90xf32, #tpu.memory_space<smem>>
    %633 = arith.index_cast %arg0 : i32 to index
    %c66 = arith.constant 66 : index
    %634 = memref.load %arg1[%633, %c66] : memref<2x90xf32, #tpu.memory_space<smem>>
    %635 = arith.index_cast %arg0 : i32 to index
    %c67 = arith.constant 67 : index
    %636 = memref.load %arg1[%635, %c67] : memref<2x90xf32, #tpu.memory_space<smem>>
    %637 = arith.index_cast %arg0 : i32 to index
    %c68 = arith.constant 68 : index
    %638 = memref.load %arg1[%637, %c68] : memref<2x90xf32, #tpu.memory_space<smem>>
    %639 = arith.index_cast %arg0 : i32 to index
    %c69 = arith.constant 69 : index
    %640 = memref.load %arg1[%639, %c69] : memref<2x90xf32, #tpu.memory_space<smem>>
    %641 = vector.broadcast %636 : f32 to vector<16x128xf32>
    %642 = arith.minimumf %591, %641 : vector<16x128xf32>
    %643 = vector.broadcast %632 : f32 to vector<16x128xf32>
    %644 = arith.maximumf %588, %643 : vector<16x128xf32>
    %645 = arith.subf %642, %644 : vector<16x128xf32>
    %cst_169 = arith.constant 0.000000e+00 : f32
    %646 = vector.broadcast %cst_169 : f32 to vector<16x128xf32>
    %647 = arith.maximumf %645, %646 : vector<16x128xf32>
    %648 = vector.broadcast %638 : f32 to vector<16x128xf32>
    %649 = arith.minimumf %597, %648 : vector<16x128xf32>
    %650 = vector.broadcast %634 : f32 to vector<16x128xf32>
    %651 = arith.maximumf %594, %650 : vector<16x128xf32>
    %652 = arith.subf %649, %651 : vector<16x128xf32>
    %cst_170 = arith.constant 0.000000e+00 : f32
    %653 = vector.broadcast %cst_170 : f32 to vector<16x128xf32>
    %654 = arith.maximumf %652, %653 : vector<16x128xf32>
    %655 = arith.mulf %647, %654 : vector<16x128xf32>
    %656 = vector.broadcast %640 : f32 to vector<16x128xf32>
    %657 = arith.addf %600, %656 : vector<16x128xf32>
    %658 = arith.cmpf ogt, %655, %657 : vector<16x128xf32>
    %659 = arith.ori %630, %658 : vector<16x128xi1>
    %660 = arith.index_cast %arg0 : i32 to index
    %c70 = arith.constant 70 : index
    %661 = memref.load %arg1[%660, %c70] : memref<2x90xf32, #tpu.memory_space<smem>>
    %662 = arith.index_cast %arg0 : i32 to index
    %c71 = arith.constant 71 : index
    %663 = memref.load %arg1[%662, %c71] : memref<2x90xf32, #tpu.memory_space<smem>>
    %664 = arith.index_cast %arg0 : i32 to index
    %c72 = arith.constant 72 : index
    %665 = memref.load %arg1[%664, %c72] : memref<2x90xf32, #tpu.memory_space<smem>>
    %666 = arith.index_cast %arg0 : i32 to index
    %c73 = arith.constant 73 : index
    %667 = memref.load %arg1[%666, %c73] : memref<2x90xf32, #tpu.memory_space<smem>>
    %668 = arith.index_cast %arg0 : i32 to index
    %c74 = arith.constant 74 : index
    %669 = memref.load %arg1[%668, %c74] : memref<2x90xf32, #tpu.memory_space<smem>>
    %670 = vector.broadcast %665 : f32 to vector<16x128xf32>
    %671 = arith.minimumf %591, %670 : vector<16x128xf32>
    %672 = vector.broadcast %661 : f32 to vector<16x128xf32>
    %673 = arith.maximumf %588, %672 : vector<16x128xf32>
    %674 = arith.subf %671, %673 : vector<16x128xf32>
    %cst_171 = arith.constant 0.000000e+00 : f32
    %675 = vector.broadcast %cst_171 : f32 to vector<16x128xf32>
    %676 = arith.maximumf %674, %675 : vector<16x128xf32>
    %677 = vector.broadcast %667 : f32 to vector<16x128xf32>
    %678 = arith.minimumf %597, %677 : vector<16x128xf32>
    %679 = vector.broadcast %663 : f32 to vector<16x128xf32>
    %680 = arith.maximumf %594, %679 : vector<16x128xf32>
    %681 = arith.subf %678, %680 : vector<16x128xf32>
    %cst_172 = arith.constant 0.000000e+00 : f32
    %682 = vector.broadcast %cst_172 : f32 to vector<16x128xf32>
    %683 = arith.maximumf %681, %682 : vector<16x128xf32>
    %684 = arith.mulf %676, %683 : vector<16x128xf32>
    %685 = vector.broadcast %669 : f32 to vector<16x128xf32>
    %686 = arith.addf %600, %685 : vector<16x128xf32>
    %687 = arith.cmpf ogt, %684, %686 : vector<16x128xf32>
    %688 = arith.ori %659, %687 : vector<16x128xi1>
    %689 = arith.index_cast %arg0 : i32 to index
    %c75 = arith.constant 75 : index
    %690 = memref.load %arg1[%689, %c75] : memref<2x90xf32, #tpu.memory_space<smem>>
    %691 = arith.index_cast %arg0 : i32 to index
    %c76 = arith.constant 76 : index
    %692 = memref.load %arg1[%691, %c76] : memref<2x90xf32, #tpu.memory_space<smem>>
    %693 = arith.index_cast %arg0 : i32 to index
    %c77 = arith.constant 77 : index
    %694 = memref.load %arg1[%693, %c77] : memref<2x90xf32, #tpu.memory_space<smem>>
    %695 = arith.index_cast %arg0 : i32 to index
    %c78 = arith.constant 78 : index
    %696 = memref.load %arg1[%695, %c78] : memref<2x90xf32, #tpu.memory_space<smem>>
    %697 = arith.index_cast %arg0 : i32 to index
    %c79 = arith.constant 79 : index
    %698 = memref.load %arg1[%697, %c79] : memref<2x90xf32, #tpu.memory_space<smem>>
    %699 = vector.broadcast %694 : f32 to vector<16x128xf32>
    %700 = arith.minimumf %591, %699 : vector<16x128xf32>
    %701 = vector.broadcast %690 : f32 to vector<16x128xf32>
    %702 = arith.maximumf %588, %701 : vector<16x128xf32>
    %703 = arith.subf %700, %702 : vector<16x128xf32>
    %cst_173 = arith.constant 0.000000e+00 : f32
    %704 = vector.broadcast %cst_173 : f32 to vector<16x128xf32>
    %705 = arith.maximumf %703, %704 : vector<16x128xf32>
    %706 = vector.broadcast %696 : f32 to vector<16x128xf32>
    %707 = arith.minimumf %597, %706 : vector<16x128xf32>
    %708 = vector.broadcast %692 : f32 to vector<16x128xf32>
    %709 = arith.maximumf %594, %708 : vector<16x128xf32>
    %710 = arith.subf %707, %709 : vector<16x128xf32>
    %cst_174 = arith.constant 0.000000e+00 : f32
    %711 = vector.broadcast %cst_174 : f32 to vector<16x128xf32>
    %712 = arith.maximumf %710, %711 : vector<16x128xf32>
    %713 = arith.mulf %705, %712 : vector<16x128xf32>
    %714 = vector.broadcast %698 : f32 to vector<16x128xf32>
    %715 = arith.addf %600, %714 : vector<16x128xf32>
    %716 = arith.cmpf ogt, %713, %715 : vector<16x128xf32>
    %717 = arith.ori %688, %716 : vector<16x128xi1>
    %718 = arith.index_cast %arg0 : i32 to index
    %c80 = arith.constant 80 : index
    %719 = memref.load %arg1[%718, %c80] : memref<2x90xf32, #tpu.memory_space<smem>>
    %720 = arith.index_cast %arg0 : i32 to index
    %c81 = arith.constant 81 : index
    %721 = memref.load %arg1[%720, %c81] : memref<2x90xf32, #tpu.memory_space<smem>>
    %722 = arith.index_cast %arg0 : i32 to index
    %c82 = arith.constant 82 : index
    %723 = memref.load %arg1[%722, %c82] : memref<2x90xf32, #tpu.memory_space<smem>>
    %724 = arith.index_cast %arg0 : i32 to index
    %c83 = arith.constant 83 : index
    %725 = memref.load %arg1[%724, %c83] : memref<2x90xf32, #tpu.memory_space<smem>>
    %726 = arith.index_cast %arg0 : i32 to index
    %c84 = arith.constant 84 : index
    %727 = memref.load %arg1[%726, %c84] : memref<2x90xf32, #tpu.memory_space<smem>>
    %728 = vector.broadcast %723 : f32 to vector<16x128xf32>
    %729 = arith.minimumf %591, %728 : vector<16x128xf32>
    %730 = vector.broadcast %719 : f32 to vector<16x128xf32>
    %731 = arith.maximumf %588, %730 : vector<16x128xf32>
    %732 = arith.subf %729, %731 : vector<16x128xf32>
    %cst_175 = arith.constant 0.000000e+00 : f32
    %733 = vector.broadcast %cst_175 : f32 to vector<16x128xf32>
    %734 = arith.maximumf %732, %733 : vector<16x128xf32>
    %735 = vector.broadcast %725 : f32 to vector<16x128xf32>
    %736 = arith.minimumf %597, %735 : vector<16x128xf32>
    %737 = vector.broadcast %721 : f32 to vector<16x128xf32>
    %738 = arith.maximumf %594, %737 : vector<16x128xf32>
    %739 = arith.subf %736, %738 : vector<16x128xf32>
    %cst_176 = arith.constant 0.000000e+00 : f32
    %740 = vector.broadcast %cst_176 : f32 to vector<16x128xf32>
    %741 = arith.maximumf %739, %740 : vector<16x128xf32>
    %742 = arith.mulf %734, %741 : vector<16x128xf32>
    %743 = vector.broadcast %727 : f32 to vector<16x128xf32>
    %744 = arith.addf %600, %743 : vector<16x128xf32>
    %745 = arith.cmpf ogt, %742, %744 : vector<16x128xf32>
    %746 = arith.ori %717, %745 : vector<16x128xi1>
    %747 = arith.index_cast %arg0 : i32 to index
    %c85 = arith.constant 85 : index
    %748 = memref.load %arg1[%747, %c85] : memref<2x90xf32, #tpu.memory_space<smem>>
    %749 = arith.index_cast %arg0 : i32 to index
    %c86 = arith.constant 86 : index
    %750 = memref.load %arg1[%749, %c86] : memref<2x90xf32, #tpu.memory_space<smem>>
    %751 = arith.index_cast %arg0 : i32 to index
    %c87 = arith.constant 87 : index
    %752 = memref.load %arg1[%751, %c87] : memref<2x90xf32, #tpu.memory_space<smem>>
    %753 = arith.index_cast %arg0 : i32 to index
    %c88 = arith.constant 88 : index
    %754 = memref.load %arg1[%753, %c88] : memref<2x90xf32, #tpu.memory_space<smem>>
    %755 = arith.index_cast %arg0 : i32 to index
    %c89 = arith.constant 89 : index
    %756 = memref.load %arg1[%755, %c89] : memref<2x90xf32, #tpu.memory_space<smem>>
    %757 = vector.broadcast %752 : f32 to vector<16x128xf32>
    %758 = arith.minimumf %591, %757 : vector<16x128xf32>
    %759 = vector.broadcast %748 : f32 to vector<16x128xf32>
    %760 = arith.maximumf %588, %759 : vector<16x128xf32>
    %761 = arith.subf %758, %760 : vector<16x128xf32>
    %cst_177 = arith.constant 0.000000e+00 : f32
    %762 = vector.broadcast %cst_177 : f32 to vector<16x128xf32>
    %763 = arith.maximumf %761, %762 : vector<16x128xf32>
    %764 = vector.broadcast %754 : f32 to vector<16x128xf32>
    %765 = arith.minimumf %597, %764 : vector<16x128xf32>
    %766 = vector.broadcast %750 : f32 to vector<16x128xf32>
    %767 = arith.maximumf %594, %766 : vector<16x128xf32>
    %768 = arith.subf %765, %767 : vector<16x128xf32>
    %cst_178 = arith.constant 0.000000e+00 : f32
    %769 = vector.broadcast %cst_178 : f32 to vector<16x128xf32>
    %770 = arith.maximumf %768, %769 : vector<16x128xf32>
    %771 = arith.mulf %763, %770 : vector<16x128xf32>
    %772 = vector.broadcast %756 : f32 to vector<16x128xf32>
    %773 = arith.addf %600, %772 : vector<16x128xf32>
    %774 = arith.cmpf ogt, %771, %773 : vector<16x128xf32>
    %775 = arith.ori %746, %774 : vector<16x128xi1>
    %c0_179 = arith.constant 0 : index
    %c4_180 = arith.constant 4 : index
    %776 = arith.index_cast %555 : i32 to index
    %c0_181 = arith.constant 0 : index
    %777 = vector.load %arg2[%c0_179, %c4_180, %776, %c0_181] : memref<1x5x48x128xf32, #tpu.memory_space<vmem>>, vector<1x1x16x128xf32>
    %778 = vector.shape_cast %777 : vector<1x1x16x128xf32> to vector<16x128xf32>
    %c0_182 = arith.constant 0 : index
    %779 = arith.index_cast %555 : i32 to index
    %c0_183 = arith.constant 0 : index
    %780 = vector.load %arg3[%c0_182, %779, %c0_183] : memref<1x48x128xf32, #tpu.memory_space<vmem>>, vector<1x16x128xf32>
    %781 = vector.shape_cast %780 : vector<1x16x128xf32> to vector<16x128xf32>
    %cst_184 = arith.constant 1.000000e+00 : f32
    %782 = vector.broadcast %cst_184 : f32 to vector<16x128xf32>
    %783 = arith.select %775, %781, %782 : vector<16x128xi1>, vector<16x128xf32>
    %784 = arith.mulf %778, %783 : vector<16x128xf32>
    %785 = math.log %784 : vector<16x128xf32>
    %cst_185 = arith.constant -1.000000e+02 : f32
    %786 = vector.broadcast %cst_185 : f32 to vector<16x128xf32>
    %787 = arith.maximumf %785, %786 : vector<16x128xf32>
    %cst_186 = arith.constant 1.000000e+00 : f32
    %788 = vector.broadcast %cst_186 : f32 to vector<16x128xf32>
    %789 = arith.subf %788, %784 : vector<16x128xf32>
    %790 = math.log %789 : vector<16x128xf32>
    %cst_187 = arith.constant -1.000000e+02 : f32
    %791 = vector.broadcast %cst_187 : f32 to vector<16x128xf32>
    %792 = arith.maximumf %790, %791 : vector<16x128xf32>
    %793 = arith.mulf %781, %787 : vector<16x128xf32>
    %cst_188 = arith.constant 1.000000e+00 : f32
    %794 = vector.broadcast %cst_188 : f32 to vector<16x128xf32>
    %795 = arith.subf %794, %781 : vector<16x128xf32>
    %796 = arith.mulf %795, %792 : vector<16x128xf32>
    %797 = arith.addf %793, %796 : vector<16x128xf32>
    %798 = arith.subf %552, %797 : vector<16x128xf32>
    %c1_i32_189 = arith.constant 1 : i32
    %cst_190 = arith.constant 1.000000e+00 : f32
    %799 = vector.broadcast %cst_190 : f32 to vector<16x128xf32>
    %800 = arith.mulf %799, %798 : vector<16x128xf32>
    %801 = arith.addf %551, %800 : vector<16x128xf32>
    %c0_191 = arith.constant 0 : index
    %c0_192 = arith.constant 0 : index
    %c0_193 = arith.constant 0 : index
    %802 = vector.load %arg8[%c0_191, %c0_192, %c0_193] : memref<1x16x128xf32, #tpu.memory_space<vmem>>, vector<1x16x128xf32>
    %803 = vector.shape_cast %802 : vector<1x16x128xf32> to vector<16x128xf32>
    %804 = vector.shape_cast %801 : vector<16x128xf32> to vector<1x16x128xf32>
    tpu.vector_store %arg8[%c0_191, %c0_192, %c0_193], %804 {strides = array<i32>} : memref<1x16x128xf32, #tpu.memory_space<vmem>>, vector<1x16x128xf32>,
    return
  }
  func.func @transform_0(%arg0: i32) -> (i32, i32) {
    %c0_i32 = arith.constant 0 : i32
    %c0_i32_0 = arith.constant 0 : i32
    %c0_i32_1 = arith.constant 0 : i32
    return %c0_i32, %c0_i32_0 : i32, i32
  }
  func.func @transform_1(%arg0: i32) -> (i32, i32, i32, i32) {
    %c0_i32 = arith.constant 0 : i32
    %c0_i32_0 = arith.constant 0 : i32
    %c0_i32_1 = arith.constant 0 : i32
    %c0_i32_2 = arith.constant 0 : i32
    return %arg0, %c0_i32, %c0_i32_0, %c0_i32_1 : i32, i32, i32, i32
  }
  func.func @transform_2(%arg0: i32) -> (i32, i32, i32) {
    %c0_i32 = arith.constant 0 : i32
    %c0_i32_0 = arith.constant 0 : i32
    %c0_i32_1 = arith.constant 0 : i32
    return %arg0, %c0_i32, %c0_i32_0 : i32, i32, i32
  }
  func.func @transform_3(%arg0: i32) -> (i32, i32, i32) {
    %c0_i32 = arith.constant 0 : i32
    %c0_i32_0 = arith.constant 0 : i32
    %c0_i32_1 = arith.constant 0 : i32
    %c0_i32_2 = arith.constant 0 : i32
    return %c0_i32, %c0_i32_0, %c0_i32_1 : i32, i32, i32
  }
  func.func @transform_4(%arg0: i32) -> (i32, i32, i32) {
    %c0_i32 = arith.constant 0 : i32
    %c0_i32_0 = arith.constant 0 : i32
    %c0_i32_1 = arith.constant 0 : i32
    return %arg0, %c0_i32, %c0_i32_0 : i32, i32, i32
  }
  func.func @transform_5(%arg0: i32) -> (i32, i32, i32) {
    %c0_i32 = arith.constant 0 : i32
    %c0_i32_0 = arith.constant 0 : i32
    %c0_i32_1 = arith.constant 0 : i32
    return %arg0, %c0_i32, %c0_i32_0 : i32, i32, i32
  }
  func.func @transform_6(%arg0: i32) -> (i32, i32, i32) {
    %c0_i32 = arith.constant 0 : i32
    %c0_i32_0 = arith.constant 0 : i32
    %c0_i32_1 = arith.constant 0 : i32
    return %arg0, %c0_i32, %c0_i32_0 : i32, i32, i32
  }
  func.func @transform_7(%arg0: i32) -> (i32, i32, i32) {
    %c0_i32 = arith.constant 0 : i32
    %c0_i32_0 = arith.constant 0 : i32
    %c0_i32_1 = arith.constant 0 : i32
    return %arg0, %c0_i32, %c0_i32_0 : i32, i32, i32
  }
}

</mosaic_0001>

<llo_original>
// kernel: device_fn.1
$region0: #{device_fn.1}
  #allocation0 [shape = 'u32[]', space=smem, size = 0x4, offset = 0x4, fixed_abs, tag = 'smem constant byte address 0x4 - core index']
  #allocation1 [shape = 'u32[144,128]{1,0:T(1,128)}', space=vmem, size = 0x12000, scoped, tag = 'internal scratch']
  %s0 = inlined_call_operand.vmem [shape: f32[2,90], index: 0, kind: input, shape index: {}]
  %s1 = inlined_call_operand.vmem [shape: f32[2,5,48,128], index: 1, kind: input, shape index: {}]
  %s2 = inlined_call_operand.vmem [shape: f32[2,48,128], index: 2, kind: input, shape index: {}]
  %s3 = inlined_call_operand.vmem [shape: f32[4,48,128], index: 3, kind: input, shape index: {}]
  %s4 = inlined_call_operand.vmem [shape: f32[2,16,128], index: 4, kind: input, shape index: {}]
  %s5 = inlined_call_operand.vmem [shape: f32[2,16,128], index: 5, kind: input, shape index: {}]
  %s6 = inlined_call_operand.vmem [shape: f32[2,16,128], index: 6, kind: input, shape index: {}]
  %s7 = inlined_call_operand.vmem [shape: f32[2,16,128], index: 7, kind: output, shape index: {}]
  %s8 = sld [smem:[#allocation0]]
  $region65: #{device_fn.1} parent=0
    _
  %s10 = ssub.s32 1, %s8
  %s11 = scalar_select 0, %s10, %s8
  $region1: #{device_fn.1} parent=0
    #allocation2 [shape = 'u8[1024]{0}', space=smem, size = 0x400, scoped, tag = 'input window, operand 0, single buffered']
    #allocation3 [shape = 's32[2]{0}', space=sflag, size = 0x8, scoped, tag = 'scoped memory for device_fn.1']
    %12 = vsyncpa [#allocation3], 0
    loop: start=0, step=1, limit=4
    $region2: #{device_fn.1} parent=1 // loop_pre_header
      _
    $region3: #{device_fn.1} parent=1 // loop_header
      %s14 = sphi 0, %s18
      %p15 = scmp.ge.s32.totalorder %s14, 4
      %s22 = sphi 0, %s22
      %s24 = sphi 0, %s22
      %s25 = sphi 0, %s24
      %s39 = sphi 0, %s25
      %s45 = sphi 0, %s47
      %s48 = sphi 0, %s45
      %s49 = sphi 0, %s48
      %s65 = sphi 0, %s49
      %s71 = sphi 0, %s73
      %s74 = sphi 0, %s71
      %s75 = sphi 0, %s74
      %s91 = sphi 0, %s75
      %s95 = sphi 0, %s95
      %s97 = sphi 0, %s95
      %s98 = sphi 0, %s97
      %s112 = sphi 0, %s98
      %s118 = sphi 0, %s120
      %s121 = sphi 0, %s118
      %s122 = sphi 0, %s121
      %s138 = sphi 0, %s122
      %s144 = sphi 0, %s146
      %s147 = sphi 0, %s144
      %s148 = sphi 0, %s147
      %s164 = sphi 0, %s148
      %s170 = sphi 0, %s172
      %s173 = sphi 0, %s170
      %s174 = sphi 0, %s173
      %s190 = sphi 0, %s174
      %s196 = sphi 0, %s198
      %s199 = sphi 0, %s196
      %s200 = sphi 0, %s199
      %s216 = sphi 0, %s200
    $region4: #{device_fn.1} parent=1 // loop_header_branch
      %17 = sbr.rel (%p15) target = $region8
    $region5: #{device_fn.1} parent=1 // loop_body
      %s19 = ssub.s32 %s14, 1
      %s20 = ssub.s32 %s14, 2
      %s21 = sadd.s32 %s14, 1
      %s23 = sadd.s32 %s22, 1
      %p26 = scmp.eq.s32.totalorder %s14, 1
      %p27 = scmp.ne.s32.totalorder %s22, %s24
      %p28 = scmp.eq.s32.totalorder %s14, 0
      %p29 = por %p27, %p28
      %p30 = scmp.ne.s32.totalorder %s22, %s24
      %p31 = scmp.eq.s32.totalorder %s19, 1
      %p32 = por %p30, %p31
      %p33 = scmp.ne.s32.totalorder %s24, %s25
      %p34 = scmp.eq.s32.totalorder %s19, 0
      %p35 = por %p33, %p34
      %p36 = scmp.ne.s32.totalorder %s24, %s25
      %p37 = scmp.eq.s32.totalorder %s20, 1
      %p38 = por %p36, %p37
      %p40 = scmp.ne.s32.totalorder %s25, %s39
      %p41 = scmp.eq.s32.totalorder %s20, 0
      %p42 = por %p40, %p41
      %s43 = ssub.s32 %s14, %s21
      %p44 = scmp.eq.s32.totalorder %s43, 0
      %s46 = sadd.s32 %s45, 1
      %s47 = scalar_select %p44, %s45, %s46
      %p50 = pneg %p44
      %p51 = scmp.eq.s32.totalorder %s14, 1
      %p52 = por %p50, %p51
      %p53 = scmp.ne.s32.totalorder %s45, %s48
      %p54 = scmp.eq.s32.totalorder %s14, 0
      %p55 = por %p53, %p54
      %p56 = scmp.ne.s32.totalorder %s45, %s48
      %p57 = scmp.eq.s32.totalorder %s19, 1
      %p58 = por %p56, %p57
      %p59 = scmp.ne.s32.totalorder %s48, %s49
      %p60 = scmp.eq.s32.totalorder %s19, 0
      %p61 = por %p59, %p60
      %p62 = scmp.ne.s32.totalorder %s48, %s49
      %p63 = scmp.eq.s32.totalorder %s20, 1
      %p64 = por %p62, %p63
      %p66 = scmp.ne.s32.totalorder %s49, %s65
      %p67 = scmp.eq.s32.totalorder %s20, 0
      %p68 = por %p66, %p67
      %s69 = ssub.s32 %s14, %s21
      %p70 = scmp.eq.s32.totalorder %s69, 0
      %s72 = sadd.s32 %s71, 1
      %s73 = scalar_select %p70, %s71, %s72
      %p76 = pneg %p70
      %p77 = scmp.eq.s32.totalorder %s14, 1
      %p78 = por %p76, %p77
      %p79 = scmp.ne.s32.totalorder %s71, %s74
      %p80 = scmp.eq.s32.totalorder %s14, 0
      %p81 = por %p79, %p80
      %p82 = scmp.ne.s32.totalorder %s71, %s74
      %p83 = scmp.eq.s32.totalorder %s19, 1
      %p84 = por %p82, %p83
      %p85 = scmp.ne.s32.totalorder %s74, %s75
      %p86 = scmp.eq.s32.totalorder %s19, 0
      %p87 = por %p85, %p86
      %p88 = scmp.ne.s32.totalorder %s74, %s75
      %p89 = scmp.eq.s32.totalorder %s20, 1
      %p90 = por %p88, %p89
      %p92 = scmp.ne.s32.totalorder %s75, %s91
      %p93 = scmp.eq.s32.totalorder %s20, 0
      %p94 = por %p92, %p93
      %s96 = sadd.s32 %s95, 1
      %p99 = scmp.eq.s32.totalorder %s14, 1
      %p100 = scmp.ne.s32.totalorder %s95, %s97
      %p101 = scmp.eq.s32.totalorder %s14, 0
      %p102 = por %p100, %p101
      %p103 = scmp.ne.s32.totalorder %s95, %s97
      %p104 = scmp.eq.s32.totalorder %s19, 1
      %p105 = por %p103, %p104
      %p106 = scmp.ne.s32.totalorder %s97, %s98
      %p107 = scmp.eq.s32.totalorder %s19, 0
      %p108 = por %p106, %p107
      %p109 = scmp.ne.s32.totalorder %s97, %s98
      %p110 = scmp.eq.s32.totalorder %s20, 1
      %p111 = por %p109, %p110
      %p113 = scmp.ne.s32.totalorder %s98, %s112
      %p114 = scmp.eq.s32.totalorder %s20, 0
      %p115 = por %p113, %p114
      %s116 = ssub.s32 %s14, %s21
      %p117 = scmp.eq.s32.totalorder %s116, 0
      %s119 = sadd.s32 %s118, 1
      %s120 = scalar_select %p117, %s118, %s119
      %p123 = pneg %p117
      %p124 = scmp.eq.s32.totalorder %s14, 1
      %p125 = por %p123, %p124
      %p126 = scmp.ne.s32.totalorder %s118, %s121
      %p127 = scmp.eq.s32.totalorder %s14, 0
      %p128 = por %p126, %p127
      %p129 = scmp.ne.s32.totalorder %s118, %s121
      %p130 = scmp.eq.s32.totalorder %s19, 1
      %p131 = por %p129, %p130
      %p132 = scmp.ne.s32.totalorder %s121, %s122
      %p133 = scmp.eq.s32.totalorder %s19, 0
      %p134 = por %p132, %p133
      %p135 = scmp.ne.s32.totalorder %s121, %s122
      %p136 = scmp.eq.s32.totalorder %s20, 1
      %p137 = por %p135, %p136
      %p139 = scmp.ne.s32.totalorder %s122, %s138
      %p140 = scmp.eq.s32.totalorder %s20, 0
      %p141 = por %p139, %p140
      %s142 = ssub.s32 %s14, %s21
      %p143 = scmp.eq.s32.totalorder %s142, 0
      %s145 = sadd.s32 %s144, 1
      %s146 = scalar_select %p143, %s144, %s145
      %p149 = pneg %p143
      %p150 = scmp.eq.s32.totalorder %s14, 1
      %p151 = por %p149, %p150
      %p152 = scmp.ne.s32.totalorder %s144, %s147
      %p153 = scmp.eq.s32.totalorder %s14, 0
      %p154 = por %p152, %p153
      %p155 = scmp.ne.s32.totalorder %s144, %s147
      %p156 = scmp.eq.s32.totalorder %s19, 1
      %p157 = por %p155, %p156
      %p158 = scmp.ne.s32.totalorder %s147, %s148
      %p159 = scmp.eq.s32.totalorder %s19, 0
      %p160 = por %p158, %p159
      %p161 = scmp.ne.s32.totalorder %s147, %s148
      %p162 = scmp.eq.s32.totalorder %s20, 1
      %p163 = por %p161, %p162
      %p165 = scmp.ne.s32.totalorder %s148, %s164
      %p166 = scmp.eq.s32.totalorder %s20, 0
      %p167 = por %p165, %p166
      %s168 = ssub.s32 %s14, %s21
      %p169 = scmp.eq.s32.totalorder %s168, 0
      %s171 = sadd.s32 %s170, 1
      %s172 = scalar_select %p169, %s170, %s171
      %p175 = pneg %p169
      %p176 = scmp.eq.s32.totalorder %s14, 1
      %p177 = por %p175, %p176
      %p178 = scmp.ne.s32.totalorder %s170, %s173
      %p179 = scmp.eq.s32.totalorder %s14, 0
      %p180 = por %p178, %p179
      %p181 = scmp.ne.s32.totalorder %s170, %s173
      %p182 = scmp.eq.s32.totalorder %s19, 1
      %p183 = por %p181, %p182
      %p184 = scmp.ne.s32.totalorder %s173, %s174
      %p185 = scmp.eq.s32.totalorder %s19, 0
      %p186 = por %p184, %p185
      %p187 = scmp.ne.s32.totalorder %s173, %s174
      %p188 = scmp.eq.s32.totalorder %s20, 1
      %p189 = por %p187, %p188
      %p191 = scmp.ne.s32.totalorder %s174, %s190
      %p192 = scmp.eq.s32.totalorder %s20, 0
      %p193 = por %p191, %p192
      %s194 = ssub.s32 %s14, %s21
      %p195 = scmp.eq.s32.totalorder %s194, 0
      %s197 = sadd.s32 %s196, 1
      %s198 = scalar_select %p195, %s196, %s197
      %p201 = pneg %p195
      %p202 = scmp.eq.s32.totalorder %s14, 1
      %p203 = por %p201, %p202
      %p204 = scmp.ne.s32.totalorder %s196, %s199
      %p205 = scmp.eq.s32.totalorder %s14, 0
      %p206 = por %p204, %p205
      %p207 = scmp.ne.s32.totalorder %s196, %s199
      %p208 = scmp.eq.s32.totalorder %s19, 1
      %p209 = por %p207, %p208
      %p210 = scmp.ne.s32.totalorder %s199, %s200
      %p211 = scmp.eq.s32.totalorder %s19, 0
      %p212 = por %p210, %p211
      %p213 = scmp.ne.s32.totalorder %s199, %s200
      %p214 = scmp.eq.s32.totalorder %s20, 1
      %p215 = por %p213, %p214
      %p217 = scmp.ne.s32.totalorder %s200, %s216
      %p218 = scmp.eq.s32.totalorder %s20, 0
      %p219 = por %p217, %p218
      %p220 = scmp.le.s32.totalorder 1, %s14
      %p221 = scmp.lt.s32.totalorder %s14, 3
      %p222 = pnand %p220, %p221
      %p223 = pneg %p222
      // Predicated region
      $region9: #{device_fn.1} parent=5 // pred_check
        _
      $region10: #{device_fn.1} parent=5 // pred_check_branch
        %225 = sbr.rel (%p222) target = $region12
      $region11: #{device_fn.1} parent=5 // pred_region
        %s226 = ssub.s32 %s14, 1
        // Predicated region
        $region13: #{device_fn.1} parent=11 // pred_check
          %p227 = pneg %p35
        $region14: #{device_fn.1} parent=11 // pred_check_branch
          %229 = sbr.rel (%p227) target = $region16
        $region15: #{device_fn.1} parent=11 // pred_region
          %s231 = ssub.s32 32, 32
          %232 = vsyncadd [#allocation3], %s231
          %s234 = sshll.u32 %s0, 4
          %s235 = int_to_ptr.vmem [resolvable:$true] %s234
          %237 = dma.vmem_to_smem %s235, 32, [#allocation2], [#allocation3]
        $region16: #{device_fn.1} parent=11 // pred_fallthru
          _
        // Predicated region
        $region17: #{device_fn.1} parent=11 // pred_check
          %p238 = pneg %p108
        $region18: #{device_fn.1} parent=11 // pred_check_branch
          %240 = sbr.rel (%p238) target = $region20
        $region19: #{device_fn.1} parent=11 // pred_region
          _
        $region20: #{device_fn.1} parent=11 // pred_fallthru
          _
      $region12: #{device_fn.1} parent=5 // pred_fallthru
        _
      %p241 = scmp.lt.s32.totalorder %s14, 2
      // Predicated region
      $region21: #{device_fn.1} parent=5 // pred_check
        %p242 = pneg %p241
      $region22: #{device_fn.1} parent=5 // pred_check_branch
        %244 = sbr.rel (%p242) target = $region24
      $region23: #{device_fn.1} parent=5 // pred_region
        // Predicated region
        $region25: #{device_fn.1} parent=23 // pred_check
          %p245 = pneg %p55
        $region26: #{device_fn.1} parent=23 // pred_check_branch
          %247 = sbr.rel (%p245) target = $region28
        $region27: #{device_fn.1} parent=23 // pred_region
          %p248 = scmp.lt.s32.totalorder %s14, 1
          %s249 = scalar_select %p248, %s14, 1
          %s250 = smul.addr %s249, 30
          %s251 = smul.addr %s250, 8
          %s252 = scalar_lea.vmem %s1, %s251
        $region28: #{device_fn.1} parent=23 // pred_fallthru
          _
        // Predicated region
        $region29: #{device_fn.1} parent=23 // pred_check
          %p253 = pneg %p81
        $region30: #{device_fn.1} parent=23 // pred_check_branch
          %255 = sbr.rel (%p253) target = $region32
        $region31: #{device_fn.1} parent=23 // pred_region
          %p256 = scmp.lt.s32.totalorder %s14, 1
          %s257 = scalar_select %p256, %s14, 1
          %s258 = smul.addr %s257, 6
          %s259 = smul.addr %s258, 8
          %s260 = scalar_lea.vmem %s2, %s259
        $region32: #{device_fn.1} parent=23 // pred_fallthru
          _
        // Predicated region
        $region33: #{device_fn.1} parent=23 // pred_check
          %p261 = pneg %p128
        $region34: #{device_fn.1} parent=23 // pred_check_branch
          %263 = sbr.rel (%p261) target = $region36
        $region35: #{device_fn.1} parent=23 // pred_region
          %p264 = scmp.lt.s32.totalorder %s14, 1
          %s265 = scalar_select %p264, %s14, 1
          %s266 = smul.addr %s265, 2
          %s267 = smul.addr %s266, 8
          %s268 = scalar_lea.vmem %s4, %s267
        $region36: #{device_fn.1} parent=23 // pred_fallthru
          _
        // Predicated region
        $region37: #{device_fn.1} parent=23 // pred_check
          %p269 = pneg %p154
        $region38: #{device_fn.1} parent=23 // pred_check_branch
          %271 = sbr.rel (%p269) target = $region40
        $region39: #{device_fn.1} parent=23 // pred_region
          %p272 = scmp.lt.s32.totalorder %s14, 1
          %s273 = scalar_select %p272, %s14, 1
          %s274 = smul.addr %s273, 2
          %s275 = smul.addr %s274, 8
          %s276 = scalar_lea.vmem %s5, %s275
        $region40: #{device_fn.1} parent=23 // pred_fallthru
          _
        // Predicated region
        $region41: #{device_fn.1} parent=23 // pred_check
          %p277 = pneg %p180
        $region42: #{device_fn.1} parent=23 // pred_check_branch
          %279 = sbr.rel (%p277) target = $region44
        $region43: #{device_fn.1} parent=23 // pred_region
          %p280 = scmp.lt.s32.totalorder %s14, 1
          %s281 = scalar_select %p280, %s14, 1
          %s282 = smul.addr %s281, 2
          %s283 = smul.addr %s282, 8
          %s284 = scalar_lea.vmem %s6, %s283
        $region44: #{device_fn.1} parent=23 // pred_fallthru
          _
      $region24: #{device_fn.1} parent=5 // pred_fallthru
        _
      %p285 = scmp.le.s32.totalorder 1, %s14
      %p286 = scmp.lt.s32.totalorder %s14, 3
      %p287 = pnand %p285, %p286
      %p288 = pneg %p287
      // Predicated region
      $region45: #{device_fn.1} parent=5 // pred_check
        _
      $region46: #{device_fn.1} parent=5 // pred_check_branch
        %290 = sbr.rel (%p287) target = $region48
      $region47: #{device_fn.1} parent=5 // pred_region
        %s291 = ssub.s32 %s14, 1
        // Predicated region
        $region49: #{device_fn.1} parent=47 // pred_check
          %p292 = pneg %p35
        $region50: #{device_fn.1} parent=47 // pred_check_branch
          %294 = sbr.rel (%p292) target = $region52
        $region51: #{device_fn.1} parent=47 // pred_region
          %295 = dma.done [#allocation3], 32
        $region52: #{device_fn.1} parent=47 // pred_fallthru
          _
        %296 = sfence
        %p297 = pneg %p35
        %p298 = pneg %p32
        %p299 = scmp.lt.s32.totalorder %s19, 1
        %s300 = scalar_select %p299, %s19, 1
        %s301 = smul.addr %s300, 30
        %s302 = smul.addr %s301, 8
        %s303 = scalar_lea.vmem %s1, %s302
        %p304 = pneg %p61
        %p305 = pneg %p58
        %p306 = scmp.lt.s32.totalorder %s19, 1
        %s307 = scalar_select %p306, %s19, 1
        %s308 = smul.addr %s307, 6
        %s309 = smul.addr %s308, 8
        %s310 = scalar_lea.vmem %s2, %s309
        %p311 = pneg %p87
        %p312 = pneg %p84
        %p313 = pneg %p108
        %p314 = pneg %p105
        %p315 = scmp.lt.s32.totalorder %s19, 1
        %s316 = scalar_select %p315, %s19, 1
        %s317 = smul.addr %s316, 2
        %s318 = smul.addr %s317, 8
        %s319 = scalar_lea.vmem %s4, %s318
        %p320 = pneg %p134
        %p321 = pneg %p131
        %p322 = scmp.lt.s32.totalorder %s19, 1
        %s323 = scalar_select %p322, %s19, 1
        %s324 = smul.addr %s323, 2
        %s325 = smul.addr %s324, 8
        %s326 = scalar_lea.vmem %s5, %s325
        %p327 = pneg %p160
        %p328 = pneg %p157
        %p329 = scmp.lt.s32.totalorder %s19, 1
        %s330 = scalar_select %p329, %s19, 1
        %s331 = smul.addr %s330, 2
        %s332 = smul.addr %s331, 8
        %s333 = scalar_lea.vmem %s6, %s332
        %p334 = pneg %p186
        %p335 = pneg %p183
        %p336 = pneg %p212
        %p337 = pneg %p209
        %p338 = scmp.lt.s32.totalorder %s19, 1
        %s339 = scalar_select %p338, %s19, 1
        %s340 = smul.addr %s339, 2
        %s341 = smul.addr %s340, 8
        %s342 = scalar_lea.vmem %s7, %s341
        %p343 = scmp.lt.s32.totalorder %s19, 1
        %s344 = scalar_select %p343, %s19, 1
        %s345 = smul.addr %s344, 30
        %s346 = smul.addr %s345, 8
        %s347 = scalar_lea.vmem %s1, %s346
        %p348 = scmp.lt.s32.totalorder %s19, 1
        %s349 = scalar_select %p348, %s19, 1
        %s350 = smul.addr %s349, 6
        %s351 = smul.addr %s350, 8
        %s352 = scalar_lea.vmem %s2, %s351
        %p353 = scmp.lt.s32.totalorder %s19, 1
        %s354 = scalar_select %p353, %s19, 1
        %s355 = smul.addr %s354, 2
        %s356 = smul.addr %s355, 8
        %s357 = scalar_lea.vmem %s4, %s356
        %p358 = scmp.lt.s32.totalorder %s19, 1
        %s359 = scalar_select %p358, %s19, 1
        %s360 = smul.addr %s359, 2
        %s361 = smul.addr %s360, 8
        %s362 = scalar_lea.vmem %s5, %s361
        %p363 = scmp.lt.s32.totalorder %s19, 1
        %s364 = scalar_select %p363, %s19, 1
        %s365 = smul.addr %s364, 2
        %s366 = smul.addr %s365, 8
        %s367 = scalar_lea.vmem %s6, %s366
        %p368 = scmp.lt.s32.totalorder %s19, 1
        %s369 = scalar_select %p368, %s19, 1
        %s370 = smul.addr %s369, 2
        %s371 = smul.addr %s370, 8
        %s372 = scalar_lea.vmem %s7, %s371
        %v373 = vld [vmem:[%s357] sm:$0xff]
        %v374 = vld [vmem:[%s357 + $0x8] sm:$0xff]
        %v375 = vld [vmem:[%s362] sm:$0xff]
        %v376 = vld [vmem:[%s362 + $0x8] sm:$0xff]
        %v377 = vld [vmem:[%s367] sm:$0xff]
        %v378 = vld [vmem:[%s367 + $0x8] sm:$0xff]
        %v379 = vlaneseq
        %v380 = vand.u32 %v379, 127
        %vm381 = vcmp.ge.s32.totalorder %v380, 2
        %vm382 = vcmp.lt.s32.totalorder %v380, 4
        %vm383 = vmand %vm381, %vm382
        %v384 = vsel %vm383, 0.5, %v373
        %v385 = vsel %vm383, 0.5, %v374
        %v386 = vlog2.pop %v384
        %v387 = vmul.f32 %v386, 0.6931472
        %v388 = vlog2.pop %v385
        %v389 = vmul.f32 %v388, 0.6931472
        %v390 = vmax.f32 %v387, -100.0
        %v391 = vmax.f32 %v389, -100.0
        %v392 = vsub.f32 1.0, %v384
        %v393 = vsub.f32 1.0, %v385
        %v394 = vlog2.pop %v392
        %v395 = vmul.f32 %v394, 0.6931472
        %v396 = vlog2.pop %v393
        %v397 = vmul.f32 %v396, 0.6931472
        %v398 = vmax.f32 %v395, -100.0
        %v399 = vmax.f32 %v397, -100.0
        %v400 = vmul.f32 %v375, %v390
        %v401 = vmul.f32 %v376, %v391
        %v402 = vsub.f32 1.0, %v375
        %v403 = vsub.f32 1.0, %v376
        %v404 = vmul.f32 %v402, %v398
        %v405 = vmul.f32 %v403, %v399
        %v406 = vadd.f32 %v400, %v404
        %v407 = vadd.f32 %v401, %v405
        %v408 = vsub.f32 0.0, %v406
        %v409 = vsub.f32 0.0, %v407
        %v410 = vsub.f32 %v373, %v375
        %v411 = vsub.f32 %v374, %v376
        %v412 = vmul.f32 %v377, %v408
        %v413 = vmul.f32 %v378, %v409
        %v414 = vsel %vm383, 0.5, 0.0
        %v415 = vmul.f32 %v410, %v410
        %v416 = vmul.f32 %v411, %v411
        %v417 = vmul.f32 %v414, %v415
        %v418 = vmul.f32 %v414, %v416
        %v419 = vadd.f32 %v412, %v417
        %v420 = vadd.f32 %v413, %v418
        %421 = vst [vmem:[%s372] sm:$0xff] %v419
        %422 = vst [vmem:[%s372 + $0x8] sm:$0xff] %v420
        %v423 = vld [vmem:[%s372] sm:$0xff]
        %v424 = vld [vmem:[%s372 + $0x8] sm:$0xff]
        %v425 = vld [vmem:[%s3] sm:$0xff]
        %v426 = vld [vmem:[%s3 + $0x8] sm:$0xff]
        %s427 = sadd.s32 0, 48
        %s428 = scalar_lea.vmem %s3, %s427
        %v429 = vld [vmem:[%s428] sm:$0xff]
        %v430 = vld [vmem:[%s428 + $0x8] sm:$0xff]
        %s431 = sadd.s32 0, 96
        %s432 = scalar_lea.vmem %s3, %s431
        %v433 = vld [vmem:[%s432] sm:$0xff]
        %v434 = vld [vmem:[%s432 + $0x8] sm:$0xff]
        %s435 = sadd.s32 0, 144
        %s436 = scalar_lea.vmem %s3, %s435
        %v437 = vld [vmem:[%s436] sm:$0xff]
        %v438 = vld [vmem:[%s436 + $0x8] sm:$0xff]
        %v439 = vld [vmem:[%s347] sm:$0xff]
        %v440 = vld [vmem:[%s347 + $0x8] sm:$0xff]
        %v441 = vadd.f32 %v439, %v425
        %v442 = vadd.f32 %v440, %v426
        %s443 = scalar_lea.vmem %s347, %s427
        %v444 = vld [vmem:[%s443] sm:$0xff]
        %v445 = vld [vmem:[%s443 + $0x8] sm:$0xff]
        %v446 = vadd.f32 %v444, %v429
        %v447 = vadd.f32 %v445, %v430
        %s448 = scalar_lea.vmem %s347, %s431
        %v449 = vld [vmem:[%s448] sm:$0xff]
        %v450 = vld [vmem:[%s448 + $0x8] sm:$0xff]
        %v451 = vmul.f32 %v449, 1.442695
        %v452 = vpow.pop %v451
        %v453 = vmul.f32 %v450, 1.442695
        %v454 = vpow.pop %v453
        %v455 = vmul.f32 %v452, %v433
        %v456 = vmul.f32 %v454, %v434
        %s457 = scalar_lea.vmem %s347, %s435
        %v458 = vld [vmem:[%s457] sm:$0xff]
        %v459 = vld [vmem:[%s457 + $0x8] sm:$0xff]
        %v460 = vmul.f32 %v458, 1.442695
        %v461 = vpow.pop %v460
        %v462 = vmul.f32 %v459, 1.442695
        %v463 = vpow.pop %v462
        %v464 = vmul.f32 %v461, %v437
        %v465 = vmul.f32 %v463, %v438
        %v466 = vmul.f32 %v455, 0.5
        %v467 = vmul.f32 %v456, 0.5
        %v468 = vsub.f32 %v441, %v466
        %v469 = vsub.f32 %v442, %v467
        %v470 = vadd.f32 %v441, %v466
        %v471 = vadd.f32 %v442, %v467
        %v472 = vmul.f32 %v464, 0.5
        %v473 = vmul.f32 %v465, 0.5
        %v474 = vsub.f32 %v446, %v472
        %v475 = vsub.f32 %v447, %v473
        %v476 = vadd.f32 %v446, %v472
        %v477 = vadd.f32 %v447, %v473
        %v478 = vmul.f32 %v455, %v464
        %v479 = vmul.f32 %v456, %v465
        %v480 = vmul.f32 %v478, 0.4117647
        %v481 = vmul.f32 %v479, 0.4117647
        %s482 = smul.u32 %s19, 128
        %s483 = sld [smem:[#allocation2 + %s482]]
        %s484 = sadd.s32 %s482, 1
        %s485 = sld [smem:[#allocation2 + %s484]]
        %s486 = sadd.s32 %s482, 2
        %s487 = sld [smem:[#allocation2 + %s486]]
        %s488 = sadd.s32 %s482, 3
        %s489 = sld [smem:[#allocation2 + %s488]]
        %s490 = sadd.s32 %s482, 4
        %s491 = sld [smem:[#allocation2 + %s490]]
        %v492 = vstv %s487
        %v493 = vmin.f32 %v470, %v492
        %v494 = vmin.f32 %v471, %v492
        %v495 = vstv %s483
        %v496 = vmax.f32 %v468, %v495
        %v497 = vmax.f32 %v469, %v495
        %v498 = vsub.f32 %v493, %v496
        %v499 = vsub.f32 %v494, %v497
        %v500 = vmax.f32 %v498, 0.0
        %v501 = vmax.f32 %v499, 0.0
        %v502 = vstv %s489
        %v503 = vmin.f32 %v476, %v502
        %v504 = vmin.f32 %v477, %v502
        %v505 = vstv %s485
        %v506 = vmax.f32 %v474, %v505
        %v507 = vmax.f32 %v475, %v505
        %v508 = vsub.f32 %v503, %v506
        %v509 = vsub.f32 %v504, %v507
        %v510 = vmax.f32 %v508, 0.0
        %v511 = vmax.f32 %v509, 0.0
        %v512 = vmul.f32 %v500, %v510
        %v513 = vmul.f32 %v501, %v511
        %v514 = vstv %s491
        %v515 = vadd.f32 %v480, %v514
        %v516 = vadd.f32 %v481, %v514
        %vm517 = vcmp.gt.f32.partialorder %v512, %v515
        %vm518 = vcmp.gt.f32.partialorder %v513, %v516
        %s519 = sadd.s32 %s482, 5
        %s520 = sld [smem:[#allocation2 + %s519]]
        %s521 = sadd.s32 %s482, 6
        %s522 = sld [smem:[#allocation2 + %s521]]
        %s523 = sadd.s32 %s482, 7
        %s524 = sld [smem:[#allocation2 + %s523]]
        %s525 = sadd.s32 %s482, 8
        %s526 = sld [smem:[#allocation2 + %s525]]
        %s527 = sadd.s32 %s482, 9
        %s528 = sld [smem:[#allocation2 + %s527]]
        %v529 = vstv %s524
        %v530 = vmin.f32 %v470, %v529
        %v531 = vmin.f32 %v471, %v529
        %v532 = vstv %s520
        %v533 = vmax.f32 %v468, %v532
        %v534 = vmax.f32 %v469, %v532
        %v535 = vsub.f32 %v530, %v533
        %v536 = vsub.f32 %v531, %v534
        %v537 = vmax.f32 %v535, 0.0
        %v538 = vmax.f32 %v536, 0.0
        %v539 = vstv %s526
        %v540 = vmin.f32 %v476, %v539
        %v541 = vmin.f32 %v477, %v539
        %v542 = vstv %s522
        %v543 = vmax.f32 %v474, %v542
        %v544 = vmax.f32 %v475, %v542
        %v545 = vsub.f32 %v540, %v543
        %v546 = vsub.f32 %v541, %v544
        %v547 = vmax.f32 %v545, 0.0
        %v548 = vmax.f32 %v546, 0.0
        %v549 = vmul.f32 %v537, %v547
        %v550 = vmul.f32 %v538, %v548
        %v551 = vstv %s528
        %v552 = vadd.f32 %v480, %v551
        %v553 = vadd.f32 %v481, %v551
        %vm554 = vcmp.gt.f32.partialorder %v549, %v552
        %vm555 = vcmp.gt.f32.partialorder %v550, %v553
        %vm556 = vmor %vm517, %vm554
        %vm557 = vmor %vm518, %vm555
        %s558 = sadd.s32 %s482, 10
        %s559 = sld [smem:[#allocation2 + %s558]]
        %s560 = sadd.s32 %s482, 11
        %s561 = sld [smem:[#allocation2 + %s560]]
        %s562 = sadd.s32 %s482, 12
        %s563 = sld [smem:[#allocation2 + %s562]]
        %s564 = sadd.s32 %s482, 13
        %s565 = sld [smem:[#allocation2 + %s564]]
        %s566 = sadd.s32 %s482, 14
        %s567 = sld [smem:[#allocation2 + %s566]]
        %v568 = vstv %s563
        %v569 = vmin.f32 %v470, %v568
        %v570 = vmin.f32 %v471, %v568
        %v571 = vstv %s559
        %v572 = vmax.f32 %v468, %v571
        %v573 = vmax.f32 %v469, %v571
        %v574 = vsub.f32 %v569, %v572
        %v575 = vsub.f32 %v570, %v573
        %v576 = vmax.f32 %v574, 0.0
        %v577 = vmax.f32 %v575, 0.0
        %v578 = vstv %s565
        %v579 = vmin.f32 %v476, %v578
        %v580 = vmin.f32 %v477, %v578
        %v581 = vstv %s561
        %v582 = vmax.f32 %v474, %v581
        %v583 = vmax.f32 %v475, %v581
        %v584 = vsub.f32 %v579, %v582
        %v585 = vsub.f32 %v580, %v583
        %v586 = vmax.f32 %v584, 0.0
        %v587 = vmax.f32 %v585, 0.0
        %v588 = vmul.f32 %v576, %v586
        %v589 = vmul.f32 %v577, %v587
        %v590 = vstv %s567
        %v591 = vadd.f32 %v480, %v590
        %v592 = vadd.f32 %v481, %v590
        %vm593 = vcmp.gt.f32.partialorder %v588, %v591
        %vm594 = vcmp.gt.f32.partialorder %v589, %v592
        %vm595 = vmor %vm556, %vm593
        %vm596 = vmor %vm557, %vm594
        %s597 = sadd.s32 %s482, 15
        %s598 = sld [smem:[#allocation2 + %s597]]
        %s599 = sadd.s32 %s482, 16
        %s600 = sld [smem:[#allocation2 + %s599]]
        %s601 = sadd.s32 %s482, 17
        %s602 = sld [smem:[#allocation2 + %s601]]
        %s603 = sadd.s32 %s482, 18
        %s604 = sld [smem:[#allocation2 + %s603]]
        %s605 = sadd.s32 %s482, 19
        %s606 = sld [smem:[#allocation2 + %s605]]
        %v607 = vstv %s602
        %v608 = vmin.f32 %v470, %v607
        %v609 = vmin.f32 %v471, %v607
        %v610 = vstv %s598
        %v611 = vmax.f32 %v468, %v610
        %v612 = vmax.f32 %v469, %v610
        %v613 = vsub.f32 %v608, %v611
        %v614 = vsub.f32 %v609, %v612
        %v615 = vmax.f32 %v613, 0.0
        %v616 = vmax.f32 %v614, 0.0
        %v617 = vstv %s604
        %v618 = vmin.f32 %v476, %v617
        %v619 = vmin.f32 %v477, %v617
        %v620 = vstv %s600
        %v621 = vmax.f32 %v474, %v620
        %v622 = vmax.f32 %v475, %v620
        %v623 = vsub.f32 %v618, %v621
        %v624 = vsub.f32 %v619, %v622
        %v625 = vmax.f32 %v623, 0.0
        %v626 = vmax.f32 %v624, 0.0
        %v627 = vmul.f32 %v615, %v625
        %v628 = vmul.f32 %v616, %v626
        %v629 = vstv %s606
        %v630 = vadd.f32 %v480, %v629
        %v631 = vadd.f32 %v481, %v629
        %vm632 = vcmp.gt.f32.partialorder %v627, %v630
        %vm633 = vcmp.gt.f32.partialorder %v628, %v631
        %vm634 = vmor %vm595, %vm632
        %vm635 = vmor %vm596, %vm633
        %s636 = sadd.s32 %s482, 20
        %s637 = sld [smem:[#allocation2 + %s636]]
        %s638 = sadd.s32 %s482, 21
        %s639 = sld [smem:[#allocation2 + %s638]]
        %s640 = sadd.s32 %s482, 22
        %s641 = sld [smem:[#allocation2 + %s640]]
        %s642 = sadd.s32 %s482, 23
        %s643 = sld [smem:[#allocation2 + %s642]]
        %s644 = sadd.s32 %s482, 24
        %s645 = sld [smem:[#allocation2 + %s644]]
        %v646 = vstv %s641
        %v647 = vmin.f32 %v470, %v646
        %v648 = vmin.f32 %v471, %v646
        %v649 = vstv %s637
        %v650 = vmax.f32 %v468, %v649
        %v651 = vmax.f32 %v469, %v649
        %v652 = vsub.f32 %v647, %v650
        %v653 = vsub.f32 %v648, %v651
        %v654 = vmax.f32 %v652, 0.0
        %v655 = vmax.f32 %v653, 0.0
        %v656 = vstv %s643
        %v657 = vmin.f32 %v476, %v656
        %v658 = vmin.f32 %v477, %v656
        %v659 = vstv %s639
        %v660 = vmax.f32 %v474, %v659
        %v661 = vmax.f32 %v475, %v659
        %v662 = vsub.f32 %v657, %v660
        %v663 = vsub.f32 %v658, %v661
        %v664 = vmax.f32 %v662, 0.0
        %v665 = vmax.f32 %v663, 0.0
        %v666 = vmul.f32 %v654, %v664
        %v667 = vmul.f32 %v655, %v665
        %v668 = vstv %s645
        %v669 = vadd.f32 %v480, %v668
        %v670 = vadd.f32 %v481, %v668
        %vm671 = vcmp.gt.f32.partialorder %v666, %v669
        %vm672 = vcmp.gt.f32.partialorder %v667, %v670
        %vm673 = vmor %vm634, %vm671
        %vm674 = vmor %vm635, %vm672
        %s675 = sadd.s32 %s482, 25
        %s676 = sld [smem:[#allocation2 + %s675]]
        %s677 = sadd.s32 %s482, 26
        %s678 = sld [smem:[#allocation2 + %s677]]
        %s679 = sadd.s32 %s482, 27
        %s680 = sld [smem:[#allocation2 + %s679]]
        %s681 = sadd.s32 %s482, 28
        %s682 = sld [smem:[#allocation2 + %s681]]
        %s683 = sadd.s32 %s482, 29
        %s684 = sld [smem:[#allocation2 + %s683]]
        %v685 = vstv %s680
        %v686 = vmin.f32 %v470, %v685
        %v687 = vmin.f32 %v471, %v685
        %v688 = vstv %s676
        %v689 = vmax.f32 %v468, %v688
        %v690 = vmax.f32 %v469, %v688
        %v691 = vsub.f32 %v686, %v689
        %v692 = vsub.f32 %v687, %v690
        %v693 = vmax.f32 %v691, 0.0
        %v694 = vmax.f32 %v692, 0.0
        %v695 = vstv %s682
        %v696 = vmin.f32 %v476, %v695
        %v697 = vmin.f32 %v477, %v695
        %v698 = vstv %s678
        %v699 = vmax.f32 %v474, %v698
        %v700 = vmax.f32 %v475, %v698
        %v701 = vsub.f32 %v696, %v699
        %v702 = vsub.f32 %v697, %v700
        %v703 = vmax.f32 %v701, 0.0
        %v704 = vmax.f32 %v702, 0.0
        %v705 = vmul.f32 %v693, %v703
        %v706 = vmul.f32 %v694, %v704
        %v707 = vstv %s684
        %v708 = vadd.f32 %v480, %v707
        %v709 = vadd.f32 %v481, %v707
        %vm710 = vcmp.gt.f32.partialorder %v705, %v708
        %vm711 = vcmp.gt.f32.partialorder %v706, %v709
        %vm712 = vmor %vm673, %vm710
        %vm713 = vmor %vm674, %vm711
        %s714 = sadd.s32 0, 192
        %s715 = scalar_lea.vmem %s347, %s714
        %v716 = vld [vmem:[%s715] sm:$0xff]
        %v717 = vld [vmem:[%s715 + $0x8] sm:$0xff]
        %v718 = vld [vmem:[%s352] sm:$0xff]
        %v719 = vld [vmem:[%s352 + $0x8] sm:$0xff]
        %v720 = vsel %vm712, %v718, 1.0
        %v721 = vsel %vm713, %v719, 1.0
        %v722 = vmul.f32 %v716, %v720
        %v723 = vmul.f32 %v717, %v721
        %v724 = vlog2.pop %v722
        %v725 = vmul.f32 %v724, 0.6931472
        %v726 = vlog2.pop %v723
        %v727 = vmul.f32 %v726, 0.6931472
        %v728 = vmax.f32 %v725, -100.0
        %v729 = vmax.f32 %v727, -100.0
        %v730 = vsub.f32 1.0, %v722
        %v731 = vsub.f32 1.0, %v723
        %v732 = vlog2.pop %v730
        %v733 = vmul.f32 %v732, 0.6931472
        %v734 = vlog2.pop %v731
        %v735 = vmul.f32 %v734, 0.6931472
        %v736 = vmax.f32 %v733, -100.0
        %v737 = vmax.f32 %v735, -100.0
        %v738 = vmul.f32 %v718, %v728
        %v739 = vmul.f32 %v719, %v729
        %v740 = vsub.f32 1.0, %v718
        %v741 = vsub.f32 1.0, %v719
        %v742 = vmul.f32 %v740, %v736
        %v743 = vmul.f32 %v741, %v737
        %v744 = vadd.f32 %v738, %v742
        %v745 = vadd.f32 %v739, %v743
        %v746 = vsub.f32 0.0, %v744
        %v747 = vsub.f32 0.0, %v745
        %v748 = vadd.f32 %v423, %v746
        %v749 = vadd.f32 %v424, %v747
        %750 = vst [vmem:[%s372] sm:$0xff] %v748
        %751 = vst [vmem:[%s372 + $0x8] sm:$0xff] %v749
        %v752 = vld [vmem:[%s372] sm:$0xff]
        %v753 = vld [vmem:[%s372 + $0x8] sm:$0xff]
        %s754 = scalar_lea.vmem %s3, 16
        %v755 = vld [vmem:[%s754] sm:$0xff]
        %v756 = vld [vmem:[%s754 + $0x8] sm:$0xff]
        %s757 = sadd.s32 16, 48
        %s758 = scalar_lea.vmem %s3, %s757
        %v759 = vld [vmem:[%s758] sm:$0xff]
        %v760 = vld [vmem:[%s758 + $0x8] sm:$0xff]
        %s761 = sadd.s32 16, 96
        %s762 = scalar_lea.vmem %s3, %s761
        %v763 = vld [vmem:[%s762] sm:$0xff]
        %v764 = vld [vmem:[%s762 + $0x8] sm:$0xff]
        %s765 = sadd.s32 16, 144
        %s766 = scalar_lea.vmem %s3, %s765
        %v767 = vld [vmem:[%s766] sm:$0xff]
        %v768 = vld [vmem:[%s766 + $0x8] sm:$0xff]
        %s769 = scalar_lea.vmem %s347, 16
        %v770 = vld [vmem:[%s769] sm:$0xff]
        %v771 = vld [vmem:[%s769 + $0x8] sm:$0xff]
        %v772 = vadd.f32 %v770, %v755
        %v773 = vadd.f32 %v771, %v756
        %s774 = scalar_lea.vmem %s347, %s757
        %v775 = vld [vmem:[%s774] sm:$0xff]
        %v776 = vld [vmem:[%s774 + $0x8] sm:$0xff]
        %v777 = vadd.f32 %v775, %v759
        %v778 = vadd.f32 %v776, %v760
        %s779 = scalar_lea.vmem %s347, %s761
        %v780 = vld [vmem:[%s779] sm:$0xff]
        %v781 = vld [vmem:[%s779 + $0x8] sm:$0xff]
        %v782 = vmul.f32 %v780, 1.442695
        %v783 = vpow.pop %v782
        %v784 = vmul.f32 %v781, 1.442695
        %v785 = vpow.pop %v784
        %v786 = vmul.f32 %v783, %v763
        %v787 = vmul.f32 %v785, %v764
        %s788 = scalar_lea.vmem %s347, %s765
        %v789 = vld [vmem:[%s788] sm:$0xff]
        %v790 = vld [vmem:[%s788 + $0x8] sm:$0xff]
        %v791 = vmul.f32 %v789, 1.442695
        %v792 = vpow.pop %v791
        %v793 = vmul.f32 %v790, 1.442695
        %v794 = vpow.pop %v793
        %v795 = vmul.f32 %v792, %v767
        %v796 = vmul.f32 %v794, %v768
        %v797 = vmul.f32 %v786, 0.5
        %v798 = vmul.f32 %v787, 0.5
        %v799 = vsub.f32 %v772, %v797
        %v800 = vsub.f32 %v773, %v798
        %v801 = vadd.f32 %v772, %v797
        %v802 = vadd.f32 %v773, %v798
        %v803 = vmul.f32 %v795, 0.5
        %v804 = vmul.f32 %v796, 0.5
        %v805 = vsub.f32 %v777, %v803
        %v806 = vsub.f32 %v778, %v804
        %v807 = vadd.f32 %v777, %v803
        %v808 = vadd.f32 %v778, %v804
        %v809 = vmul.f32 %v786, %v795
        %v810 = vmul.f32 %v787, %v796
        %v811 = vmul.f32 %v809, 0.4117647
        %v812 = vmul.f32 %v810, 0.4117647
        %s813 = sadd.s32 %s482, 30
        %s814 = sld [smem:[#allocation2 + %s813]]
        %s815 = sadd.s32 %s482, 31
        %s816 = sld [smem:[#allocation2 + %s815]]
        %s817 = sadd.s32 %s482, 32
        %s818 = sld [smem:[#allocation2 + %s817]]
        %s819 = sadd.s32 %s482, 33
        %s820 = sld [smem:[#allocation2 + %s819]]
        %s821 = sadd.s32 %s482, 34
        %s822 = sld [smem:[#allocation2 + %s821]]
        %v823 = vstv %s818
        %v824 = vmin.f32 %v801, %v823
        %v825 = vmin.f32 %v802, %v823
        %v826 = vstv %s814
        %v827 = vmax.f32 %v799, %v826
        %v828 = vmax.f32 %v800, %v826
        %v829 = vsub.f32 %v824, %v827
        %v830 = vsub.f32 %v825, %v828
        %v831 = vmax.f32 %v829, 0.0
        %v832 = vmax.f32 %v830, 0.0
        %v833 = vstv %s820
        %v834 = vmin.f32 %v807, %v833
        %v835 = vmin.f32 %v808, %v833
        %v836 = vstv %s816
        %v837 = vmax.f32 %v805, %v836
        %v838 = vmax.f32 %v806, %v836
        %v839 = vsub.f32 %v834, %v837
        %v840 = vsub.f32 %v835, %v838
        %v841 = vmax.f32 %v839, 0.0
        %v842 = vmax.f32 %v840, 0.0
        %v843 = vmul.f32 %v831, %v841
        %v844 = vmul.f32 %v832, %v842
        %v845 = vstv %s822
        %v846 = vadd.f32 %v811, %v845
        %v847 = vadd.f32 %v812, %v845
        %vm848 = vcmp.gt.f32.partialorder %v843, %v846
        %vm849 = vcmp.gt.f32.partialorder %v844, %v847
        %s850 = sadd.s32 %s482, 35
        %s851 = sld [smem:[#allocation2 + %s850]]
        %s852 = sadd.s32 %s482, 36
        %s853 = sld [smem:[#allocation2 + %s852]]
        %s854 = sadd.s32 %s482, 37
        %s855 = sld [smem:[#allocation2 + %s854]]
        %s856 = sadd.s32 %s482, 38
        %s857 = sld [smem:[#allocation2 + %s856]]
        %s858 = sadd.s32 %s482, 39
        %s859 = sld [smem:[#allocation2 + %s858]]
        %v860 = vstv %s855
        %v861 = vmin.f32 %v801, %v860
        %v862 = vmin.f32 %v802, %v860
        %v863 = vstv %s851
        %v864 = vmax.f32 %v799, %v863
        %v865 = vmax.f32 %v800, %v863
        %v866 = vsub.f32 %v861, %v864
        %v867 = vsub.f32 %v862, %v865
        %v868 = vmax.f32 %v866, 0.0
        %v869 = vmax.f32 %v867, 0.0
        %v870 = vstv %s857
        %v871 = vmin.f32 %v807, %v870
        %v872 = vmin.f32 %v808, %v870
        %v873 = vstv %s853
        %v874 = vmax.f32 %v805, %v873
        %v875 = vmax.f32 %v806, %v873
        %v876 = vsub.f32 %v871, %v874
        %v877 = vsub.f32 %v872, %v875
        %v878 = vmax.f32 %v876, 0.0
        %v879 = vmax.f32 %v877, 0.0
        %v880 = vmul.f32 %v868, %v878
        %v881 = vmul.f32 %v869, %v879
        %v882 = vstv %s859
        %v883 = vadd.f32 %v811, %v882
        %v884 = vadd.f32 %v812, %v882
        %vm885 = vcmp.gt.f32.partialorder %v880, %v883
        %vm886 = vcmp.gt.f32.partialorder %v881, %v884
        %vm887 = vmor %vm848, %vm885
        %vm888 = vmor %vm849, %vm886
        %s889 = sadd.s32 %s482, 40
        %s890 = sld [smem:[#allocation2 + %s889]]
        %s891 = sadd.s32 %s482, 41
        %s892 = sld [smem:[#allocation2 + %s891]]
        %s893 = sadd.s32 %s482, 42
        %s894 = sld [smem:[#allocation2 + %s893]]
        %s895 = sadd.s32 %s482, 43
        %s896 = sld [smem:[#allocation2 + %s895]]
        %s897 = sadd.s32 %s482, 44
        %s898 = sld [smem:[#allocation2 + %s897]]
        %v899 = vstv %s894
        %v900 = vmin.f32 %v801, %v899
        %v901 = vmin.f32 %v802, %v899
        %v902 = vstv %s890
        %v903 = vmax.f32 %v799, %v902
        %v904 = vmax.f32 %v800, %v902
        %v905 = vsub.f32 %v900, %v903
        %v906 = vsub.f32 %v901, %v904
        %v907 = vmax.f32 %v905, 0.0
        %v908 = vmax.f32 %v906, 0.0
        %v909 = vstv %s896
        %v910 = vmin.f32 %v807, %v909
        %v911 = vmin.f32 %v808, %v909
        %v912 = vstv %s892
        %v913 = vmax.f32 %v805, %v912
        %v914 = vmax.f32 %v806, %v912
        %v915 = vsub.f32 %v910, %v913
        %v916 = vsub.f32 %v911, %v914
        %v917 = vmax.f32 %v915, 0.0
        %v918 = vmax.f32 %v916, 0.0
        %v919 = vmul.f32 %v907, %v917
        %v920 = vmul.f32 %v908, %v918
        %v921 = vstv %s898
        %v922 = vadd.f32 %v811, %v921
        %v923 = vadd.f32 %v812, %v921
        %vm924 = vcmp.gt.f32.partialorder %v919, %v922
        %vm925 = vcmp.gt.f32.partialorder %v920, %v923
        %vm926 = vmor %vm887, %vm924
        %vm927 = vmor %vm888, %vm925
        %s928 = sadd.s32 %s482, 45
        %s929 = sld [smem:[#allocation2 + %s928]]
        %s930 = sadd.s32 %s482, 46
        %s931 = sld [smem:[#allocation2 + %s930]]
        %s932 = sadd.s32 %s482, 47
        %s933 = sld [smem:[#allocation2 + %s932]]
        %s934 = sadd.s32 %s482, 48
        %s935 = sld [smem:[#allocation2 + %s934]]
        %s936 = sadd.s32 %s482, 49
        %s937 = sld [smem:[#allocation2 + %s936]]
        %v938 = vstv %s933
        %v939 = vmin.f32 %v801, %v938
        %v940 = vmin.f32 %v802, %v938
        %v941 = vstv %s929
        %v942 = vmax.f32 %v799, %v941
        %v943 = vmax.f32 %v800, %v941
        %v944 = vsub.f32 %v939, %v942
        %v945 = vsub.f32 %v940, %v943
        %v946 = vmax.f32 %v944, 0.0
        %v947 = vmax.f32 %v945, 0.0
        %v948 = vstv %s935
        %v949 = vmin.f32 %v807, %v948
        %v950 = vmin.f32 %v808, %v948
        %v951 = vstv %s931
        %v952 = vmax.f32 %v805, %v951
        %v953 = vmax.f32 %v806, %v951
        %v954 = vsub.f32 %v949, %v952
        %v955 = vsub.f32 %v950, %v953
        %v956 = vmax.f32 %v954, 0.0
        %v957 = vmax.f32 %v955, 0.0
        %v958 = vmul.f32 %v946, %v956
        %v959 = vmul.f32 %v947, %v957
        %v960 = vstv %s937
        %v961 = vadd.f32 %v811, %v960
        %v962 = vadd.f32 %v812, %v960
        %vm963 = vcmp.gt.f32.partialorder %v958, %v961
        %vm964 = vcmp.gt.f32.partialorder %v959, %v962
        %vm965 = vmor %vm926, %vm963
        %vm966 = vmor %vm927, %vm964
        %s967 = sadd.s32 %s482, 50
        %s968 = sld [smem:[#allocation2 + %s967]]
        %s969 = sadd.s32 %s482, 51
        %s970 = sld [smem:[#allocation2 + %s969]]
        %s971 = sadd.s32 %s482, 52
        %s972 = sld [smem:[#allocation2 + %s971]]
        %s973 = sadd.s32 %s482, 53
        %s974 = sld [smem:[#allocation2 + %s973]]
        %s975 = sadd.s32 %s482, 54
        %s976 = sld [smem:[#allocation2 + %s975]]
        %v977 = vstv %s972
        %v978 = vmin.f32 %v801, %v977
        %v979 = vmin.f32 %v802, %v977
        %v980 = vstv %s968
        %v981 = vmax.f32 %v799, %v980
        %v982 = vmax.f32 %v800, %v980
        %v983 = vsub.f32 %v978, %v981
        %v984 = vsub.f32 %v979, %v982
        %v985 = vmax.f32 %v983, 0.0
        %v986 = vmax.f32 %v984, 0.0
        %v987 = vstv %s974
        %v988 = vmin.f32 %v807, %v987
        %v989 = vmin.f32 %v808, %v987
        %v990 = vstv %s970
        %v991 = vmax.f32 %v805, %v990
        %v992 = vmax.f32 %v806, %v990
        %v993 = vsub.f32 %v988, %v991
        %v994 = vsub.f32 %v989, %v992
        %v995 = vmax.f32 %v993, 0.0
        %v996 = vmax.f32 %v994, 0.0
        %v997 = vmul.f32 %v985, %v995
        %v998 = vmul.f32 %v986, %v996
        %v999 = vstv %s976
        %v1000 = vadd.f32 %v811, %v999
        %v1001 = vadd.f32 %v812, %v999
        %vm1002 = vcmp.gt.f32.partialorder %v997, %v1000
        %vm1003 = vcmp.gt.f32.partialorder %v998, %v1001
        %vm1004 = vmor %vm965, %vm1002
        %vm1005 = vmor %vm966, %vm1003
        %s1006 = sadd.s32 %s482, 55
        %s1007 = sld [smem:[#allocation2 + %s1006]]
        %s1008 = sadd.s32 %s482, 56
        %s1009 = sld [smem:[#allocation2 + %s1008]]
        %s1010 = sadd.s32 %s482, 57
        %s1011 = sld [smem:[#allocation2 + %s1010]]
        %s1012 = sadd.s32 %s482, 58
        %s1013 = sld [smem:[#allocation2 + %s1012]]
        %s1014 = sadd.s32 %s482, 59
        %s1015 = sld [smem:[#allocation2 + %s1014]]
        %v1016 = vstv %s1011
        %v1017 = vmin.f32 %v801, %v1016
        %v1018 = vmin.f32 %v802, %v1016
        %v1019 = vstv %s1007
        %v1020 = vmax.f32 %v799, %v1019
        %v1021 = vmax.f32 %v800, %v1019
        %v1022 = vsub.f32 %v1017, %v1020
        %v1023 = vsub.f32 %v1018, %v1021
        %v1024 = vmax.f32 %v1022, 0.0
        %v1025 = vmax.f32 %v1023, 0.0
        %v1026 = vstv %s1013
        %v1027 = vmin.f32 %v807, %v1026
        %v1028 = vmin.f32 %v808, %v1026
        %v1029 = vstv %s1009
        %v1030 = vmax.f32 %v805, %v1029
        %v1031 = vmax.f32 %v806, %v1029
        %v1032 = vsub.f32 %v1027, %v1030
        %v1033 = vsub.f32 %v1028, %v1031
        %v1034 = vmax.f32 %v1032, 0.0
        %v1035 = vmax.f32 %v1033, 0.0
        %v1036 = vmul.f32 %v1024, %v1034
        %v1037 = vmul.f32 %v1025, %v1035
        %v1038 = vstv %s1015
        %v1039 = vadd.f32 %v811, %v1038
        %v1040 = vadd.f32 %v812, %v1038
        %vm1041 = vcmp.gt.f32.partialorder %v1036, %v1039
        %vm1042 = vcmp.gt.f32.partialorder %v1037, %v1040
        %vm1043 = vmor %vm1004, %vm1041
        %vm1044 = vmor %vm1005, %vm1042
        %s1045 = sadd.s32 16, 192
        %s1046 = scalar_lea.vmem %s347, %s1045
        %v1047 = vld [vmem:[%s1046] sm:$0xff]
        %v1048 = vld [vmem:[%s1046 + $0x8] sm:$0xff]
        %s1049 = scalar_lea.vmem %s352, 16
        %v1050 = vld [vmem:[%s1049] sm:$0xff]
        %v1051 = vld [vmem:[%s1049 + $0x8] sm:$0xff]
        %v1052 = vsel %vm1043, %v1050, 1.0
        %v1053 = vsel %vm1044, %v1051, 1.0
        %v1054 = vmul.f32 %v1047, %v1052
        %v1055 = vmul.f32 %v1048, %v1053
        %v1056 = vlog2.pop %v1054
        %v1057 = vmul.f32 %v1056, 0.6931472
        %v1058 = vlog2.pop %v1055
        %v1059 = vmul.f32 %v1058, 0.6931472
        %v1060 = vmax.f32 %v1057, -100.0
        %v1061 = vmax.f32 %v1059, -100.0
        %v1062 = vsub.f32 1.0, %v1054
        %v1063 = vsub.f32 1.0, %v1055
        %v1064 = vlog2.pop %v1062
        %v1065 = vmul.f32 %v1064, 0.6931472
        %v1066 = vlog2.pop %v1063
        %v1067 = vmul.f32 %v1066, 0.6931472
        %v1068 = vmax.f32 %v1065, -100.0
        %v1069 = vmax.f32 %v1067, -100.0
        %v1070 = vmul.f32 %v1050, %v1060
        %v1071 = vmul.f32 %v1051, %v1061
        %v1072 = vsub.f32 1.0, %v1050
        %v1073 = vsub.f32 1.0, %v1051
        %v1074 = vmul.f32 %v1072, %v1068
        %v1075 = vmul.f32 %v1073, %v1069
        %v1076 = vadd.f32 %v1070, %v1074
        %v1077 = vadd.f32 %v1071, %v1075
        %v1078 = vsub.f32 0.0, %v1076
        %v1079 = vsub.f32 0.0, %v1077
        %v1080 = vadd.f32 %v752, %v1078
        %v1081 = vadd.f32 %v753, %v1079
        %1082 = vst [vmem:[%s372] sm:$0xff] %v1080
        %1083 = vst [vmem:[%s372 + $0x8] sm:$0xff] %v1081
        %v1084 = vld [vmem:[%s372] sm:$0xff]
        %v1085 = vld [vmem:[%s372 + $0x8] sm:$0xff]
        %s1086 = scalar_lea.vmem %s3, 32
        %v1087 = vld [vmem:[%s1086] sm:$0xff]
        %v1088 = vld [vmem:[%s1086 + $0x8] sm:$0xff]
        %s1089 = sadd.s32 32, 48
        %s1090 = scalar_lea.vmem %s3, %s1089
        %v1091 = vld [vmem:[%s1090] sm:$0xff]
        %v1092 = vld [vmem:[%s1090 + $0x8] sm:$0xff]
        %s1093 = sadd.s32 32, 96
        %s1094 = scalar_lea.vmem %s3, %s1093
        %v1095 = vld [vmem:[%s1094] sm:$0xff]
        %v1096 = vld [vmem:[%s1094 + $0x8] sm:$0xff]
        %s1097 = sadd.s32 32, 144
        %s1098 = scalar_lea.vmem %s3, %s1097
        %v1099 = vld [vmem:[%s1098] sm:$0xff]
        %v1100 = vld [vmem:[%s1098 + $0x8] sm:$0xff]
        %s1101 = scalar_lea.vmem %s347, 32
        %v1102 = vld [vmem:[%s1101] sm:$0xff]
        %v1103 = vld [vmem:[%s1101 + $0x8] sm:$0xff]
        %v1104 = vadd.f32 %v1102, %v1087
        %v1105 = vadd.f32 %v1103, %v1088
        %s1106 = scalar_lea.vmem %s347, %s1089
        %v1107 = vld [vmem:[%s1106] sm:$0xff]
        %v1108 = vld [vmem:[%s1106 + $0x8] sm:$0xff]
        %v1109 = vadd.f32 %v1107, %v1091
        %v1110 = vadd.f32 %v1108, %v1092
        %s1111 = scalar_lea.vmem %s347, %s1093
        %v1112 = vld [vmem:[%s1111] sm:$0xff]
        %v1113 = vld [vmem:[%s1111 + $0x8] sm:$0xff]
        %v1114 = vmul.f32 %v1112, 1.442695
        %v1115 = vpow.pop %v1114
        %v1116 = vmul.f32 %v1113, 1.442695
        %v1117 = vpow.pop %v1116
        %v1118 = vmul.f32 %v1115, %v1095
        %v1119 = vmul.f32 %v1117, %v1096
        %s1120 = scalar_lea.vmem %s347, %s1097
        %v1121 = vld [vmem:[%s1120] sm:$0xff]
        %v1122 = vld [vmem:[%s1120 + $0x8] sm:$0xff]
        %v1123 = vmul.f32 %v1121, 1.442695
        %v1124 = vpow.pop %v1123
        %v1125 = vmul.f32 %v1122, 1.442695
        %v1126 = vpow.pop %v1125
        %v1127 = vmul.f32 %v1124, %v1099
        %v1128 = vmul.f32 %v1126, %v1100
        %v1129 = vmul.f32 %v1118, 0.5
        %v1130 = vmul.f32 %v1119, 0.5
        %v1131 = vsub.f32 %v1104, %v1129
        %v1132 = vsub.f32 %v1105, %v1130
        %v1133 = vadd.f32 %v1104, %v1129
        %v1134 = vadd.f32 %v1105, %v1130
        %v1135 = vmul.f32 %v1127, 0.5
        %v1136 = vmul.f32 %v1128, 0.5
        %v1137 = vsub.f32 %v1109, %v1135
        %v1138 = vsub.f32 %v1110, %v1136
        %v1139 = vadd.f32 %v1109, %v1135
        %v1140 = vadd.f32 %v1110, %v1136
        %v1141 = vmul.f32 %v1118, %v1127
        %v1142 = vmul.f32 %v1119, %v1128
        %v1143 = vmul.f32 %v1141, 0.4117647
        %v1144 = vmul.f32 %v1142, 0.4117647
        %s1145 = sadd.s32 %s482, 60
        %s1146 = sld [smem:[#allocation2 + %s1145]]
        %s1147 = sadd.s32 %s482, 61
        %s1148 = sld [smem:[#allocation2 + %s1147]]
        %s1149 = sadd.s32 %s482, 62
        %s1150 = sld [smem:[#allocation2 + %s1149]]
        %s1151 = sadd.s32 %s482, 63
        %s1152 = sld [smem:[#allocation2 + %s1151]]
        %s1153 = sadd.s32 %s482, 64
        %s1154 = sld [smem:[#allocation2 + %s1153]]
        %v1155 = vstv %s1150
        %v1156 = vmin.f32 %v1133, %v1155
        %v1157 = vmin.f32 %v1134, %v1155
        %v1158 = vstv %s1146
        %v1159 = vmax.f32 %v1131, %v1158
        %v1160 = vmax.f32 %v1132, %v1158
        %v1161 = vsub.f32 %v1156, %v1159
        %v1162 = vsub.f32 %v1157, %v1160
        %v1163 = vmax.f32 %v1161, 0.0
        %v1164 = vmax.f32 %v1162, 0.0
        %v1165 = vstv %s1152
        %v1166 = vmin.f32 %v1139, %v1165
        %v1167 = vmin.f32 %v1140, %v1165
        %v1168 = vstv %s1148
        %v1169 = vmax.f32 %v1137, %v1168
        %v1170 = vmax.f32 %v1138, %v1168
        %v1171 = vsub.f32 %v1166, %v1169
        %v1172 = vsub.f32 %v1167, %v1170
        %v1173 = vmax.f32 %v1171, 0.0
        %v1174 = vmax.f32 %v1172, 0.0
        %v1175 = vmul.f32 %v1163, %v1173
        %v1176 = vmul.f32 %v1164, %v1174
        %v1177 = vstv %s1154
        %v1178 = vadd.f32 %v1143, %v1177
        %v1179 = vadd.f32 %v1144, %v1177
        %vm1180 = vcmp.gt.f32.partialorder %v1175, %v1178
        %vm1181 = vcmp.gt.f32.partialorder %v1176, %v1179
        %s1182 = sadd.s32 %s482, 65
        %s1183 = sld [smem:[#allocation2 + %s1182]]
        %s1184 = sadd.s32 %s482, 66
        %s1185 = sld [smem:[#allocation2 + %s1184]]
        %s1186 = sadd.s32 %s482, 67
        %s1187 = sld [smem:[#allocation2 + %s1186]]
        %s1188 = sadd.s32 %s482, 68
        %s1189 = sld [smem:[#allocation2 + %s1188]]
        %s1190 = sadd.s32 %s482, 69
        %s1191 = sld [smem:[#allocation2 + %s1190]]
        %v1192 = vstv %s1187
        %v1193 = vmin.f32 %v1133, %v1192
        %v1194 = vmin.f32 %v1134, %v1192
        %v1195 = vstv %s1183
        %v1196 = vmax.f32 %v1131, %v1195
        %v1197 = vmax.f32 %v1132, %v1195
        %v1198 = vsub.f32 %v1193, %v1196
        %v1199 = vsub.f32 %v1194, %v1197
        %v1200 = vmax.f32 %v1198, 0.0
        %v1201 = vmax.f32 %v1199, 0.0
        %v1202 = vstv %s1189
        %v1203 = vmin.f32 %v1139, %v1202
        %v1204 = vmin.f32 %v1140, %v1202
        %v1205 = vstv %s1185
        %v1206 = vmax.f32 %v1137, %v1205
        %v1207 = vmax.f32 %v1138, %v1205
        %v1208 = vsub.f32 %v1203, %v1206
        %v1209 = vsub.f32 %v1204, %v1207
        %v1210 = vmax.f32 %v1208, 0.0
        %v1211 = vmax.f32 %v1209, 0.0
        %v1212 = vmul.f32 %v1200, %v1210
        %v1213 = vmul.f32 %v1201, %v1211
        %v1214 = vstv %s1191
        %v1215 = vadd.f32 %v1143, %v1214
        %v1216 = vadd.f32 %v1144, %v1214
        %vm1217 = vcmp.gt.f32.partialorder %v1212, %v1215
        %vm1218 = vcmp.gt.f32.partialorder %v1213, %v1216
        %vm1219 = vmor %vm1180, %vm1217
        %vm1220 = vmor %vm1181, %vm1218
        %s1221 = sadd.s32 %s482, 70
        %s1222 = sld [smem:[#allocation2 + %s1221]]
        %s1223 = sadd.s32 %s482, 71
        %s1224 = sld [smem:[#allocation2 + %s1223]]
        %s1225 = sadd.s32 %s482, 72
        %s1226 = sld [smem:[#allocation2 + %s1225]]
        %s1227 = sadd.s32 %s482, 73
        %s1228 = sld [smem:[#allocation2 + %s1227]]
        %s1229 = sadd.s32 %s482, 74
        %s1230 = sld [smem:[#allocation2 + %s1229]]
        %v1231 = vstv %s1226
        %v1232 = vmin.f32 %v1133, %v1231
        %v1233 = vmin.f32 %v1134, %v1231
        %v1234 = vstv %s1222
        %v1235 = vmax.f32 %v1131, %v1234
        %v1236 = vmax.f32 %v1132, %v1234
        %v1237 = vsub.f32 %v1232, %v1235
        %v1238 = vsub.f32 %v1233, %v1236
        %v1239 = vmax.f32 %v1237, 0.0
        %v1240 = vmax.f32 %v1238, 0.0
        %v1241 = vstv %s1228
        %v1242 = vmin.f32 %v1139, %v1241
        %v1243 = vmin.f32 %v1140, %v1241
        %v1244 = vstv %s1224
        %v1245 = vmax.f32 %v1137, %v1244
        %v1246 = vmax.f32 %v1138, %v1244
        %v1247 = vsub.f32 %v1242, %v1245
        %v1248 = vsub.f32 %v1243, %v1246
        %v1249 = vmax.f32 %v1247, 0.0
        %v1250 = vmax.f32 %v1248, 0.0
        %v1251 = vmul.f32 %v1239, %v1249
        %v1252 = vmul.f32 %v1240, %v1250
        %v1253 = vstv %s1230
        %v1254 = vadd.f32 %v1143, %v1253
        %v1255 = vadd.f32 %v1144, %v1253
        %vm1256 = vcmp.gt.f32.partialorder %v1251, %v1254
        %vm1257 = vcmp.gt.f32.partialorder %v1252, %v1255
        %vm1258 = vmor %vm1219, %vm1256
        %vm1259 = vmor %vm1220, %vm1257
        %s1260 = sadd.s32 %s482, 75
        %s1261 = sld [smem:[#allocation2 + %s1260]]
        %s1262 = sadd.s32 %s482, 76
        %s1263 = sld [smem:[#allocation2 + %s1262]]
        %s1264 = sadd.s32 %s482, 77
        %s1265 = sld [smem:[#allocation2 + %s1264]]
        %s1266 = sadd.s32 %s482, 78
        %s1267 = sld [smem:[#allocation2 + %s1266]]
        %s1268 = sadd.s32 %s482, 79
        %s1269 = sld [smem:[#allocation2 + %s1268]]
        %v1270 = vstv %s1265
        %v1271 = vmin.f32 %v1133, %v1270
        %v1272 = vmin.f32 %v1134, %v1270
        %v1273 = vstv %s1261
        %v1274 = vmax.f32 %v1131, %v1273
        %v1275 = vmax.f32 %v1132, %v1273
        %v1276 = vsub.f32 %v1271, %v1274
        %v1277 = vsub.f32 %v1272, %v1275
        %v1278 = vmax.f32 %v1276, 0.0
        %v1279 = vmax.f32 %v1277, 0.0
        %v1280 = vstv %s1267
        %v1281 = vmin.f32 %v1139, %v1280
        %v1282 = vmin.f32 %v1140, %v1280
        %v1283 = vstv %s1263
        %v1284 = vmax.f32 %v1137, %v1283
        %v1285 = vmax.f32 %v1138, %v1283
        %v1286 = vsub.f32 %v1281, %v1284
        %v1287 = vsub.f32 %v1282, %v1285
        %v1288 = vmax.f32 %v1286, 0.0
        %v1289 = vmax.f32 %v1287, 0.0
        %v1290 = vmul.f32 %v1278, %v1288
        %v1291 = vmul.f32 %v1279, %v1289
        %v1292 = vstv %s1269
        %v1293 = vadd.f32 %v1143, %v1292
        %v1294 = vadd.f32 %v1144, %v1292
        %vm1295 = vcmp.gt.f32.partialorder %v1290, %v1293
        %vm1296 = vcmp.gt.f32.partialorder %v1291, %v1294
        %vm1297 = vmor %vm1258, %vm1295
        %vm1298 = vmor %vm1259, %vm1296
        %s1299 = sadd.s32 %s482, 80
        %s1300 = sld [smem:[#allocation2 + %s1299]]
        %s1301 = sadd.s32 %s482, 81
        %s1302 = sld [smem:[#allocation2 + %s1301]]
        %s1303 = sadd.s32 %s482, 82
        %s1304 = sld [smem:[#allocation2 + %s1303]]
        %s1305 = sadd.s32 %s482, 83
        %s1306 = sld [smem:[#allocation2 + %s1305]]
        %s1307 = sadd.s32 %s482, 84
        %s1308 = sld [smem:[#allocation2 + %s1307]]
        %v1309 = vstv %s1304
        %v1310 = vmin.f32 %v1133, %v1309
        %v1311 = vmin.f32 %v1134, %v1309
        %v1312 = vstv %s1300
        %v1313 = vmax.f32 %v1131, %v1312
        %v1314 = vmax.f32 %v1132, %v1312
        %v1315 = vsub.f32 %v1310, %v1313
        %v1316 = vsub.f32 %v1311, %v1314
        %v1317 = vmax.f32 %v1315, 0.0
        %v1318 = vmax.f32 %v1316, 0.0
        %v1319 = vstv %s1306
        %v1320 = vmin.f32 %v1139, %v1319
        %v1321 = vmin.f32 %v1140, %v1319
        %v1322 = vstv %s1302
        %v1323 = vmax.f32 %v1137, %v1322
        %v1324 = vmax.f32 %v1138, %v1322
        %v1325 = vsub.f32 %v1320, %v1323
        %v1326 = vsub.f32 %v1321, %v1324
        %v1327 = vmax.f32 %v1325, 0.0
        %v1328 = vmax.f32 %v1326, 0.0
        %v1329 = vmul.f32 %v1317, %v1327
        %v1330 = vmul.f32 %v1318, %v1328
        %v1331 = vstv %s1308
        %v1332 = vadd.f32 %v1143, %v1331
        %v1333 = vadd.f32 %v1144, %v1331
        %vm1334 = vcmp.gt.f32.partialorder %v1329, %v1332
        %vm1335 = vcmp.gt.f32.partialorder %v1330, %v1333
        %vm1336 = vmor %vm1297, %vm1334
        %vm1337 = vmor %vm1298, %vm1335
        %s1338 = sadd.s32 %s482, 85
        %s1339 = sld [smem:[#allocation2 + %s1338]]
        %s1340 = sadd.s32 %s482, 86
        %s1341 = sld [smem:[#allocation2 + %s1340]]
        %s1342 = sadd.s32 %s482, 87
        %s1343 = sld [smem:[#allocation2 + %s1342]]
        %s1344 = sadd.s32 %s482, 88
        %s1345 = sld [smem:[#allocation2 + %s1344]]
        %s1346 = sadd.s32 %s482, 89
        %s1347 = sld [smem:[#allocation2 + %s1346]]
        %v1348 = vstv %s1343
        %v1349 = vmin.f32 %v1133, %v1348
        %v1350 = vmin.f32 %v1134, %v1348
        %v1351 = vstv %s1339
        %v1352 = vmax.f32 %v1131, %v1351
        %v1353 = vmax.f32 %v1132, %v1351
        %v1354 = vsub.f32 %v1349, %v1352
        %v1355 = vsub.f32 %v1350, %v1353
        %v1356 = vmax.f32 %v1354, 0.0
        %v1357 = vmax.f32 %v1355, 0.0
        %v1358 = vstv %s1345
        %v1359 = vmin.f32 %v1139, %v1358
        %v1360 = vmin.f32 %v1140, %v1358
        %v1361 = vstv %s1341
        %v1362 = vmax.f32 %v1137, %v1361
        %v1363 = vmax.f32 %v1138, %v1361
        %v1364 = vsub.f32 %v1359, %v1362
        %v1365 = vsub.f32 %v1360, %v1363
        %v1366 = vmax.f32 %v1364, 0.0
        %v1367 = vmax.f32 %v1365, 0.0
        %v1368 = vmul.f32 %v1356, %v1366
        %v1369 = vmul.f32 %v1357, %v1367
        %v1370 = vstv %s1347
        %v1371 = vadd.f32 %v1143, %v1370
        %v1372 = vadd.f32 %v1144, %v1370
        %vm1373 = vcmp.gt.f32.partialorder %v1368, %v1371
        %vm1374 = vcmp.gt.f32.partialorder %v1369, %v1372
        %vm1375 = vmor %vm1336, %vm1373
        %vm1376 = vmor %vm1337, %vm1374
        %s1377 = sadd.s32 32, 192
        %s1378 = scalar_lea.vmem %s347, %s1377
        %v1379 = vld [vmem:[%s1378] sm:$0xff]
        %v1380 = vld [vmem:[%s1378 + $0x8] sm:$0xff]
        %s1381 = scalar_lea.vmem %s352, 32
        %v1382 = vld [vmem:[%s1381] sm:$0xff]
        %v1383 = vld [vmem:[%s1381 + $0x8] sm:$0xff]
        %v1384 = vsel %vm1375, %v1382, 1.0
        %v1385 = vsel %vm1376, %v1383, 1.0
        %v1386 = vmul.f32 %v1379, %v1384
        %v1387 = vmul.f32 %v1380, %v1385
        %v1388 = vlog2.pop %v1386
        %v1389 = vmul.f32 %v1388, 0.6931472
        %v1390 = vlog2.pop %v1387
        %v1391 = vmul.f32 %v1390, 0.6931472
        %v1392 = vmax.f32 %v1389, -100.0
        %v1393 = vmax.f32 %v1391, -100.0
        %v1394 = vsub.f32 1.0, %v1386
        %v1395 = vsub.f32 1.0, %v1387
        %v1396 = vlog2.pop %v1394
        %v1397 = vmul.f32 %v1396, 0.6931472
        %v1398 = vlog2.pop %v1395
        %v1399 = vmul.f32 %v1398, 0.6931472
        %v1400 = vmax.f32 %v1397, -100.0
        %v1401 = vmax.f32 %v1399, -100.0
        %v1402 = vmul.f32 %v1382, %v1392
        %v1403 = vmul.f32 %v1383, %v1393
        %v1404 = vsub.f32 1.0, %v1382
        %v1405 = vsub.f32 1.0, %v1383
        %v1406 = vmul.f32 %v1404, %v1400
        %v1407 = vmul.f32 %v1405, %v1401
        %v1408 = vadd.f32 %v1402, %v1406
        %v1409 = vadd.f32 %v1403, %v1407
        %v1410 = vsub.f32 0.0, %v1408
        %v1411 = vsub.f32 0.0, %v1409
        %v1412 = vadd.f32 %v1084, %v1410
        %v1413 = vadd.f32 %v1085, %v1411
        %1414 = vst [vmem:[%s372] sm:$0xff] %v1412
        %1415 = vst [vmem:[%s372 + $0x8] sm:$0xff] %v1413
        %p1416 = scmp.lt.s32.totalorder %s19, 1
        %s1417 = scalar_select %p1416, %s19, 1
        %s1418 = smul.addr %s1417, 2
        %s1419 = smul.addr %s1418, 8
        %s1420 = scalar_lea.vmem %s7, %s1419
        // Predicated region
        $region53: #{device_fn.1} parent=47 // pred_check
          %p1421 = pneg %p209
        $region54: #{device_fn.1} parent=47 // pred_check_branch
          %1423 = sbr.rel (%p1421) target = $region56
        $region55: #{device_fn.1} parent=47 // pred_region
          _
        $region56: #{device_fn.1} parent=47 // pred_fallthru
          _
      $region48: #{device_fn.1} parent=5 // pred_fallthru
        _
      %p1424 = scmp.le.s32.totalorder 2, %s14
      // Predicated region
      $region57: #{device_fn.1} parent=5 // pred_check
        %p1425 = pneg %p1424
      $region58: #{device_fn.1} parent=5 // pred_check_branch
        %1427 = sbr.rel (%p1425) target = $region60
      $region59: #{device_fn.1} parent=5 // pred_region
        %s1428 = ssub.s32 %s14, 2
        // Predicated region
        $region61: #{device_fn.1} parent=59 // pred_check
          %p1429 = pneg %p215
        $region62: #{device_fn.1} parent=59 // pred_check_branch
          %1431 = sbr.rel (%p1429) target = $region64
        $region63: #{device_fn.1} parent=59 // pred_region
          %p1432 = scmp.lt.s32.totalorder %s20, 1
          %s1433 = scalar_select %p1432, %s20, 1
          %s1434 = smul.addr %s1433, 2
          %s1435 = smul.addr %s1434, 8
          %s1436 = scalar_lea.vmem %s7, %s1435
        $region64: #{device_fn.1} parent=59 // pred_fallthru
          _
      $region60: #{device_fn.1} parent=5 // pred_fallthru
        _
    $region6: #{device_fn.1} parent=1 // loop_footer
      %s18 = sadd.s32 1, %s14
    $region7: #{device_fn.1} parent=1 // loop_footer_branch
      %13 = sbr.rel target = $region3
    $region8: #{device_fn.1} parent=1 // loop_exit
      _
    %1437 = vsyncpa [#allocation3], 1
    %s1438 = scalar_lea.sflag [#allocation3], 1
    %1439 = vsyncpa %s1438, 1

</llo_original>
